<compile_context>
chip_gen: v7x
topology: tpu7x:2x2x1
jax: 0.10.0
libtpu: 0.0.40
codegen_flags: <defaults>
</compile_context>

<pallas_src>
import functools

import jax
import jax.numpy as jnp
import numpy as np
from jax.experimental import pallas as pl
from jax.experimental.pallas import tpu as pltpu


# ---------------------------------------------------------------------------
# Pallas kernel: one grid cell = one batch element (all heads fused).
# ---------------------------------------------------------------------------
def _mm_attn_kernel(x_ref, gamma_ref, beta_ref, wqkv_ref, taps_ref, o_ref, *,
                    heads, dim_head, num_pathways, ln_eps, conv_k,
                    compute_dtype, approx_recip):
    n = x_ref.shape[0]
    d = dim_head
    inner = heads * d
    m = num_pathways
    pad = conv_k // 2

    x = x_ref[...].astype(jnp.float32)                       # (N, DIM)

    # ---- LayerNorm over the feature axis (biased variance, like torch) ----
    mean = jnp.mean(x, axis=-1, keepdims=True)
    xc = x - mean
    var = jnp.mean(xc * xc, axis=-1, keepdims=True)
    xn = xc * jax.lax.rsqrt(var + ln_eps)
    xn = xn * gamma_ref[...] + beta_ref[...]                  # (N, DIM)

    # ---- fused lane-dense QKV projection (1/sqrt(d) pre-folded into Wq) ----
    qkv = jnp.dot(xn.astype(compute_dtype), wqkv_ref[...],
                  preferred_element_type=jnp.float32)         # (N, 3*inner) f32
    q = qkv[:, :inner]
    k = qkv[:, inner:2 * inner]
    v = qkv[:, 2 * inner:]

    # ---- residual: depthwise conv along tokens, all heads at once ----
    # res[i, :] = sum_t taps[t, :] * v[i + t - pad, :]  (zero outside [0, N)).
    rows = jax.lax.broadcasted_iota(jnp.int32, (n, 1), 0)
    res = jnp.zeros((n, inner), jnp.float32)
    for t in range(conv_k):
        s = t - pad
        if s <= -n or s >= n:
            continue                                  # tap never lands in-range
        taps_row = taps_ref[t:t + 1, :]               # (1, inner)
        if s == 0:
            res = res + v * taps_row
        else:
            shifted = pltpu.roll(v, shift=(-s) % n, axis=0)   # circular v[i+s]
            mask = ((rows >= -s) & (rows < n - s)).astype(jnp.float32)
            res = res + (shifted * mask) * taps_row

    # ---- per-head attention ----
    dn_bt = (((1,), (1,)), ((), ()))          # contract last dims: A @ B^T
    path_outs = []
    hist_outs = []
    for h in range(heads):
        lo, hi = h * d, (h + 1) * d
        qh = q[:, lo:hi]
        kh = k[:, lo:hi]
        vh = v[:, lo:hi]

        # pathway rows attend to all N keys:
        #   softmax(cat(qp kp^T, qp kh^T)) == softmax(qp k^T)
        s_p = jax.lax.dot_general(qh[:m].astype(compute_dtype),
                                  kh.astype(compute_dtype), dn_bt,
                                  preferred_element_type=jnp.float32)   # (M, N)
        s_p = s_p - jnp.max(s_p, axis=-1, keepdims=True)
        e_p = jnp.exp(s_p)
        a_p = e_p * pl.reciprocal(jnp.sum(e_p, axis=-1, keepdims=True),
                                  approx=approx_recip)
        path_outs.append(jnp.dot(a_p.astype(compute_dtype),
                                 vh.astype(compute_dtype),
                                 preferred_element_type=jnp.float32))   # (M, D)

        # histology rows attend to the M pathway keys only.
        s_h = jax.lax.dot_general(qh[m:].astype(compute_dtype),
                                  kh[:m].astype(compute_dtype), dn_bt,
                                  preferred_element_type=jnp.float32)   # (N-M, M)
        s_h = s_h - jnp.max(s_h, axis=-1, keepdims=True)
        e_h = jnp.exp(s_h)
        a_h = e_h * pl.reciprocal(jnp.sum(e_h, axis=-1, keepdims=True),
                                  approx=approx_recip)
        hist_outs.append(jnp.dot(a_h.astype(compute_dtype),
                                 vh[:m].astype(compute_dtype),
                                 preferred_element_type=jnp.float32))   # (N-M, D)

    out_path = jnp.concatenate(path_outs, axis=-1)    # (M,   H*D) lane-dense
    out_hist = jnp.concatenate(hist_outs, axis=-1)    # (N-M, H*D) lane-dense

    # Two lane-dense stores over disjoint row ranges (no row concat).
    o_ref[:m, :] = (out_path + res[:m, :]).astype(o_ref.dtype)
    o_ref[m:, :] = (out_hist + res[m:, :]).astype(o_ref.dtype)


# ---------------------------------------------------------------------------
# Wrapper: parameter plumbing + pallas_call.
# ---------------------------------------------------------------------------
def mm_attention_layer(x, params, *, heads, dim_head, num_pathways,
                       residual_conv_kernel=33, ln_eps=1e-5,
                       compute_dtype=jnp.bfloat16):
    b, n, dim = x.shape
    d = dim_head
    inner = heads * d
    scale = d ** -0.5
    ksz = residual_conv_kernel

    # torch Linear: y = x @ W^T with W of shape (3*inner, dim).  Fuse Q/K/V
    # into one lane-dense (dim, 3*inner) weight and fold the 1/sqrt(d) scale
    # into the Q columns so the kernel never multiplies q by scale.
    W = params["w_qkv"].astype(jnp.float32)
    wqkv = W.T                                                    # (dim, 3*inner)
    col_scale = jnp.concatenate([jnp.full((inner,), scale, jnp.float32),
                                 jnp.ones((2 * inner,), jnp.float32)])
    wqkv = (wqkv * col_scale[None, :]).astype(compute_dtype)

    gamma = params["ln_gamma"].reshape(1, dim).astype(jnp.float32)
    beta = params["ln_beta"].reshape(1, dim).astype(jnp.float32)

    # Conv taps: grouped Conv2d(H, H, (K,1), groups=H) weight (H,1,K,1) ->
    # per-tap row (K, H*d): taps[t, h*d:(h+1)*d] = w[h, t].
    wconv = params["conv_w"].reshape(heads, ksz).astype(jnp.float32)
    taps = jnp.repeat(wconv.T[:, :, None], d, axis=-1).reshape(ksz, inner)

    approx = jnp.dtype(compute_dtype) != jnp.dtype(jnp.float32)
    kernel = functools.partial(
        _mm_attn_kernel, heads=heads, dim_head=d, num_pathways=num_pathways,
        ln_eps=ln_eps, conv_k=ksz, compute_dtype=compute_dtype,
        approx_recip=approx)

    # NOTE: for very long sequences (N >> 1024, e.g. v7x's 64 MiB VMEM) add a
    # token-tile grid axis over the histology rows (they only attend to the M
    # pathway keys, so they tile with no cross-tile softmax state).
    out = pl.pallas_call(
        kernel,
        out_shape=jax.ShapeDtypeStruct((b, n, inner), x.dtype),
        grid=(b,),
        in_specs=[
            pl.BlockSpec((None, n, dim), lambda i: (i, 0, 0)),     # x (per batch)
            pl.BlockSpec((1, dim), lambda i: (0, 0)),              # gamma (resident)
            pl.BlockSpec((1, dim), lambda i: (0, 0)),              # beta  (resident)
            pl.BlockSpec((dim, 3 * inner), lambda i: (0, 0)),      # fused Wqkv
            pl.BlockSpec((ksz, inner), lambda i: (0, 0)),          # conv taps
        ],
        out_specs=pl.BlockSpec((None, n, inner), lambda i: (i, 0, 0)),
        compiler_params=pltpu.CompilerParams(
            dimension_semantics=("parallel",)),
    )(x, gamma, beta, wqkv, taps)
    return out                                                    # (B, N, H*D)


# ---------------------------------------------------------------------------
# Pure-JAX reference (mirrors the PyTorch forward) for a correctness check.
# ---------------------------------------------------------------------------
def reference(x, params, *, heads, dim_head, num_pathways,
              residual_conv_kernel=33, ln_eps=1e-5):
    b, n, dim = x.shape
    d = dim_head
    m = num_pathways
    ksz = residual_conv_kernel
    pad = ksz // 2

    gamma = params["ln_gamma"]
    beta = params["ln_beta"]
    mean = x.mean(-1, keepdims=True)
    var = ((x - mean) ** 2).mean(-1, keepdims=True)
    xn = (x - mean) / jnp.sqrt(var + ln_eps) * gamma + beta

    qkv = xn @ params["w_qkv"].T                                 # (B, N, 3*inner)
    q, k, v = jnp.split(qkv, 3, axis=-1)
    reshp = lambda t: t.reshape(b, n, heads, d).transpose(0, 2, 1, 3)  # (B,H,N,D)
    q, k, v = map(reshp, (q, k, v))
    q = q * (d ** -0.5)

    qp, qh = q[:, :, :m], q[:, :, m:]
    kp, kh = k[:, :, :m], k[:, :, m:]

    cross_hist = jnp.einsum("bhid,bhjd->bhij", qh, kp)
    attn_path = jnp.einsum("bhid,bhjd->bhij", qp, kp)
    cross_path = jnp.einsum("bhid,bhjd->bhij", qp, kh)

    cross_hist = jax.nn.softmax(cross_hist, axis=-1)
    attn_ph = jax.nn.softmax(jnp.concatenate([attn_path, cross_path], -1), -1)

    out_p = jnp.einsum("bhij,bhjd->bhid", attn_ph, v)
    out_h = jnp.einsum("bhij,bhjd->bhid", cross_hist, v[:, :, :m])
    out = jnp.concatenate([out_p, out_h], axis=2)                # (B, H, N, D)

    # depthwise conv residual via a Toeplitz matrix (reference only)
    wconv = params["conv_w"].reshape(heads, ksz)
    idx = jnp.arange(n)
    rel = idx[None, :] - idx[:, None] + pad
    valid = (rel >= 0) & (rel < ksz)
    cmat = jnp.where(valid[None], wconv[:, jnp.clip(rel, 0, ksz - 1)], 0.0)
    out = out + jnp.einsum("hij,bhjd->bhid", cmat, v)

    return out.transpose(0, 2, 1, 3).reshape(b, n, heads * d)


if __name__ == "__main__":
    # Small shapes consistent with the module's forward.
    B, N, DIM = 2, 16, 32
    HEADS, D_HEAD = 2, 8
    NUM_PATHWAYS = 8            # tokens [:8] are pathways, [8:] are histology
    KSZ = 33                    # residual_conv_kernel (module default)

    key = jax.random.PRNGKey(0)
    k0, k1, k2, k3, k4 = jax.random.split(key, 5)
    inner = HEADS * D_HEAD

    x = jax.random.normal(k0, (B, N, DIM), dtype=jnp.float32)
    params = {
        "ln_gamma": 1.0 + 0.1 * jax.random.normal(k1, (DIM,), dtype=jnp.float32),
        "ln_beta": 0.1 * jax.random.normal(k2, (DIM,), dtype=jnp.float32),
        "w_qkv": 0.05 * jax.random.normal(k3, (3 * inner, DIM), dtype=jnp.float32),
        "conv_w": 0.05 * jax.random.normal(k4, (HEADS, 1, KSZ, 1), dtype=jnp.float32),
    }

    ref = reference(x, params, heads=HEADS, dim_head=D_HEAD,
                    num_pathways=NUM_PATHWAYS, residual_conv_kernel=KSZ)
    ref = np.asarray(jax.block_until_ready(ref))

    # Full-precision path (f32 MXU operands) -- tight correctness check.
    out_f32 = mm_attention_layer(x, params, heads=HEADS, dim_head=D_HEAD,
                                 num_pathways=NUM_PATHWAYS,
                                 residual_conv_kernel=KSZ,
                                 compute_dtype=jnp.float32)
    out_f32 = np.asarray(jax.block_until_ready(out_f32))
    np.testing.assert_allclose(out_f32, ref, rtol=2e-3, atol=2e-3)

    # Production path (bf16 MXU operands, f32 accumulation) -- looser check.
    out_bf16 = mm_attention_layer(x, params, heads=HEADS, dim_head=D_HEAD,
                                  num_pathways=NUM_PATHWAYS,
                                  residual_conv_kernel=KSZ,
                                  compute_dtype=jnp.bfloat16)
    out_bf16 = np.asarray(jax.block_until_ready(out_bf16))
    np.testing.assert_allclose(out_bf16, ref, rtol=3e-2, atol=3e-2)

    print("KERNEL_OK")
</pallas_src>

<mosaic_0001>
module attributes {stable_mosaic.version = 11 : i64} {
  func.func @_mm_attn_kernel(%arg0: i32, %arg1: memref<1x16x32xf32, #tpu.memory_space<vmem>>, %arg2: memref<1x32xf32, #tpu.memory_space<vmem>>, %arg3: memref<1x32xf32, #tpu.memory_space<vmem>>, %arg4: memref<32x48xf32, #tpu.memory_space<vmem>>, %arg5: memref<33x16xf32, #tpu.memory_space<vmem>>, %arg6: memref<1x16x16xf32, #tpu.memory_space<vmem>>) attributes {dimension_semantics = [#tpu.dimension_semantics<parallel>], iteration_bounds = array<i64: 2>, scalar_prefetch = 0 : i64, scratch_operands = 0 : i64, tpu.core_type = #tpu.core_type<tc>, window_params = [{transform_indices = @transform_0, window_bounds = array<i64: 1, 16, 32>}, {pipeline_mode = #tpu.pipeline_mode<synchronous>, transform_indices = @transform_1, window_bounds = array<i64: 1, 32>}, {pipeline_mode = #tpu.pipeline_mode<synchronous>, transform_indices = @transform_2, window_bounds = array<i64: 1, 32>}, {pipeline_mode = #tpu.pipeline_mode<synchronous>, transform_indices = @transform_3, window_bounds = array<i64: 32, 48>}, {pipeline_mode = #tpu.pipeline_mode<synchronous>, transform_indices = @transform_4, window_bounds = array<i64: 33, 16>}, {transform_indices = @transform_5, window_bounds = array<i64: 1, 16, 16>}]} {
    %c0 = arith.constant 0 : index
    %c0_0 = arith.constant 0 : index
    %c0_1 = arith.constant 0 : index
    %0 = vector.load %arg1[%c0, %c0_0, %c0_1] : memref<1x16x32xf32, #tpu.memory_space<vmem>>, vector<1x16x32xf32>
    %1 = vector.shape_cast %0 : vector<1x16x32xf32> to vector<16x32xf32>
    %cst = arith.constant dense<0.000000e+00> : vector<16xf32>
    %2 = vector.multi_reduction <add>, %1, %cst [1] : vector<16x32xf32> to vector<16xf32>
    %3 = vector.shape_cast %2 : vector<16xf32> to vector<16x1xf32>
    %cst_2 = arith.constant 3.200000e+01 : f32
    %4 = vector.broadcast %cst_2 : f32 to vector<16x1xf32>
    %5 = arith.divf %3, %4 : vector<16x1xf32>
    %6 = vector.broadcast %5 : vector<16x1xf32> to vector<16x32xf32>
    %7 = arith.subf %1, %6 : vector<16x32xf32>
    %8 = arith.mulf %7, %7 : vector<16x32xf32>
    %cst_3 = arith.constant dense<0.000000e+00> : vector<16xf32>
    %9 = vector.multi_reduction <add>, %8, %cst_3 [1] : vector<16x32xf32> to vector<16xf32>
    %10 = vector.shape_cast %9 : vector<16xf32> to vector<16x1xf32>
    %cst_4 = arith.constant 3.200000e+01 : f32
    %11 = vector.broadcast %cst_4 : f32 to vector<16x1xf32>
    %12 = arith.divf %10, %11 : vector<16x1xf32>
    %cst_5 = arith.constant 9.99999974E-6 : f32
    %13 = vector.broadcast %cst_5 : f32 to vector<16x1xf32>
    %14 = arith.addf %12, %13 : vector<16x1xf32>
    %15 = math.rsqrt %14 : vector<16x1xf32>
    %16 = vector.broadcast %15 : vector<16x1xf32> to vector<16x32xf32>
    %17 = arith.mulf %7, %16 : vector<16x32xf32>
    %c0_6 = arith.constant 0 : index
    %c0_7 = arith.constant 0 : index
    %18 = vector.load %arg2[%c0_6, %c0_7] : memref<1x32xf32, #tpu.memory_space<vmem>>, vector<1x32xf32>
    %19 = vector.broadcast %18 : vector<1x32xf32> to vector<16x32xf32>
    %20 = arith.mulf %17, %19 : vector<16x32xf32>
    %c0_8 = arith.constant 0 : index
    %c0_9 = arith.constant 0 : index
    %21 = vector.load %arg3[%c0_8, %c0_9] : memref<1x32xf32, #tpu.memory_space<vmem>>, vector<1x32xf32>
    %22 = vector.broadcast %21 : vector<1x32xf32> to vector<16x32xf32>
    %23 = arith.addf %20, %22 : vector<16x32xf32>
    %c0_10 = arith.constant 0 : index
    %c0_11 = arith.constant 0 : index
    %24 = vector.load %arg4[%c0_10, %c0_11] : memref<32x48xf32, #tpu.memory_space<vmem>>, vector<32x48xf32>
    %cst_12 = arith.constant dense<0.000000e+00> : vector<16x48xf32>
    %25 = tpu.matmul %23, %24, %cst_12 {dimension_numbers = #tpu.dot_dimension_numbers<[1], [0], [0], [1], [0, 0, 1, 1], [], []>} : vector<16x32xf32>, vector<32x48xf32>, vector<16x48xf32> -> vector<16x48xf32>
    %26 = vector.extract_strided_slice %25 {offsets = [0, 0], sizes = [16, 16], strides = [1, 1]} : vector<16x48xf32> to vector<16x16xf32>
    %27 = vector.extract_strided_slice %25 {offsets = [0, 16], sizes = [16, 16], strides = [1, 1]} : vector<16x48xf32> to vector<16x16xf32>
    %28 = vector.extract_strided_slice %25 {offsets = [0, 32], sizes = [16, 16], strides = [1, 1]} : vector<16x48xf32> to vector<16x16xf32>
    %29 = tpu.iota {dimensions = array<i32: 0>} : vector<16x1xi32>
    %cst_13 = arith.constant 0.000000e+00 : f32
    %30 = vector.broadcast %cst_13 : f32 to vector<16x16xf32>
    %c1 = arith.constant 1 : index
    %c0_14 = arith.constant 0 : index
    %31 = vector.load %arg5[%c1, %c0_14] : memref<33x16xf32, #tpu.memory_space<vmem>>, vector<1x16xf32>
    %c15_i32 = arith.constant 15 : i32
    %32 = tpu.dynamic_rotate %28 by %c15_i32 dim 0 : vector<16x16xf32>, i32 -> vector<16x16xf32>
    %c15_i32_15 = arith.constant 15 : i32
    %33 = vector.broadcast %c15_i32_15 : i32 to vector<16x1xi32>
    %34 = arith.cmpi sge, %29, %33 : vector<16x1xi32>
    %c31_i32 = arith.constant 31 : i32
    %35 = vector.broadcast %c31_i32 : i32 to vector<16x1xi32>
    %36 = arith.cmpi slt, %29, %35 : vector<16x1xi32>
    %37 = arith.andi %34, %36 : vector<16x1xi1>
    %38 = arith.extui %37 : vector<16x1xi1> to vector<16x1xi32>
    %39 = arith.sitofp %38 : vector<16x1xi32> to vector<16x1xf32>
    %40 = vector.broadcast %39 : vector<16x1xf32> to vector<16x16xf32>
    %41 = arith.mulf %32, %40 : vector<16x16xf32>
    %42 = vector.broadcast %31 : vector<1x16xf32> to vector<16x16xf32>
    %43 = arith.mulf %41, %42 : vector<16x16xf32>
    %44 = arith.addf %30, %43 : vector<16x16xf32>
    %c2 = arith.constant 2 : index
    %c0_16 = arith.constant 0 : index
    %45 = vector.load %arg5[%c2, %c0_16] : memref<33x16xf32, #tpu.memory_space<vmem>>, vector<1x16xf32>
    %c14_i32 = arith.constant 14 : i32
    %46 = tpu.dynamic_rotate %28 by %c14_i32 dim 0 : vector<16x16xf32>, i32 -> vector<16x16xf32>
    %c14_i32_17 = arith.constant 14 : i32
    %47 = vector.broadcast %c14_i32_17 : i32 to vector<16x1xi32>
    %48 = arith.cmpi sge, %29, %47 : vector<16x1xi32>
    %c30_i32 = arith.constant 30 : i32
    %49 = vector.broadcast %c30_i32 : i32 to vector<16x1xi32>
    %50 = arith.cmpi slt, %29, %49 : vector<16x1xi32>
    %51 = arith.andi %48, %50 : vector<16x1xi1>
    %52 = arith.extui %51 : vector<16x1xi1> to vector<16x1xi32>
    %53 = arith.sitofp %52 : vector<16x1xi32> to vector<16x1xf32>
    %54 = vector.broadcast %53 : vector<16x1xf32> to vector<16x16xf32>
    %55 = arith.mulf %46, %54 : vector<16x16xf32>
    %56 = vector.broadcast %45 : vector<1x16xf32> to vector<16x16xf32>
    %57 = arith.mulf %55, %56 : vector<16x16xf32>
    %58 = arith.addf %44, %57 : vector<16x16xf32>
    %c3 = arith.constant 3 : index
    %c0_18 = arith.constant 0 : index
    %59 = vector.load %arg5[%c3, %c0_18] : memref<33x16xf32, #tpu.memory_space<vmem>>, vector<1x16xf32>
    %c13_i32 = arith.constant 13 : i32
    %60 = tpu.dynamic_rotate %28 by %c13_i32 dim 0 : vector<16x16xf32>, i32 -> vector<16x16xf32>
    %c13_i32_19 = arith.constant 13 : i32
    %61 = vector.broadcast %c13_i32_19 : i32 to vector<16x1xi32>
    %62 = arith.cmpi sge, %29, %61 : vector<16x1xi32>
    %c29_i32 = arith.constant 29 : i32
    %63 = vector.broadcast %c29_i32 : i32 to vector<16x1xi32>
    %64 = arith.cmpi slt, %29, %63 : vector<16x1xi32>
    %65 = arith.andi %62, %64 : vector<16x1xi1>
    %66 = arith.extui %65 : vector<16x1xi1> to vector<16x1xi32>
    %67 = arith.sitofp %66 : vector<16x1xi32> to vector<16x1xf32>
    %68 = vector.broadcast %67 : vector<16x1xf32> to vector<16x16xf32>
    %69 = arith.mulf %60, %68 : vector<16x16xf32>
    %70 = vector.broadcast %59 : vector<1x16xf32> to vector<16x16xf32>
    %71 = arith.mulf %69, %70 : vector<16x16xf32>
    %72 = arith.addf %58, %71 : vector<16x16xf32>
    %c4 = arith.constant 4 : index
    %c0_20 = arith.constant 0 : index
    %73 = vector.load %arg5[%c4, %c0_20] : memref<33x16xf32, #tpu.memory_space<vmem>>, vector<1x16xf32>
    %c12_i32 = arith.constant 12 : i32
    %74 = tpu.dynamic_rotate %28 by %c12_i32 dim 0 : vector<16x16xf32>, i32 -> vector<16x16xf32>
    %c12_i32_21 = arith.constant 12 : i32
    %75 = vector.broadcast %c12_i32_21 : i32 to vector<16x1xi32>
    %76 = arith.cmpi sge, %29, %75 : vector<16x1xi32>
    %c28_i32 = arith.constant 28 : i32
    %77 = vector.broadcast %c28_i32 : i32 to vector<16x1xi32>
    %78 = arith.cmpi slt, %29, %77 : vector<16x1xi32>
    %79 = arith.andi %76, %78 : vector<16x1xi1>
    %80 = arith.extui %79 : vector<16x1xi1> to vector<16x1xi32>
    %81 = arith.sitofp %80 : vector<16x1xi32> to vector<16x1xf32>
    %82 = vector.broadcast %81 : vector<16x1xf32> to vector<16x16xf32>
    %83 = arith.mulf %74, %82 : vector<16x16xf32>
    %84 = vector.broadcast %73 : vector<1x16xf32> to vector<16x16xf32>
    %85 = arith.mulf %83, %84 : vector<16x16xf32>
    %86 = arith.addf %72, %85 : vector<16x16xf32>
    %c5 = arith.constant 5 : index
    %c0_22 = arith.constant 0 : index
    %87 = vector.load %arg5[%c5, %c0_22] : memref<33x16xf32, #tpu.memory_space<vmem>>, vector<1x16xf32>
    %c11_i32 = arith.constant 11 : i32
    %88 = tpu.dynamic_rotate %28 by %c11_i32 dim 0 : vector<16x16xf32>, i32 -> vector<16x16xf32>
    %c11_i32_23 = arith.constant 11 : i32
    %89 = vector.broadcast %c11_i32_23 : i32 to vector<16x1xi32>
    %90 = arith.cmpi sge, %29, %89 : vector<16x1xi32>
    %c27_i32 = arith.constant 27 : i32
    %91 = vector.broadcast %c27_i32 : i32 to vector<16x1xi32>
    %92 = arith.cmpi slt, %29, %91 : vector<16x1xi32>
    %93 = arith.andi %90, %92 : vector<16x1xi1>
    %94 = arith.extui %93 : vector<16x1xi1> to vector<16x1xi32>
    %95 = arith.sitofp %94 : vector<16x1xi32> to vector<16x1xf32>
    %96 = vector.broadcast %95 : vector<16x1xf32> to vector<16x16xf32>
    %97 = arith.mulf %88, %96 : vector<16x16xf32>
    %98 = vector.broadcast %87 : vector<1x16xf32> to vector<16x16xf32>
    %99 = arith.mulf %97, %98 : vector<16x16xf32>
    %100 = arith.addf %86, %99 : vector<16x16xf32>
    %c6 = arith.constant 6 : index
    %c0_24 = arith.constant 0 : index
    %101 = vector.load %arg5[%c6, %c0_24] : memref<33x16xf32, #tpu.memory_space<vmem>>, vector<1x16xf32>
    %c10_i32 = arith.constant 10 : i32
    %102 = tpu.dynamic_rotate %28 by %c10_i32 dim 0 : vector<16x16xf32>, i32 -> vector<16x16xf32>
    %c10_i32_25 = arith.constant 10 : i32
    %103 = vector.broadcast %c10_i32_25 : i32 to vector<16x1xi32>
    %104 = arith.cmpi sge, %29, %103 : vector<16x1xi32>
    %c26_i32 = arith.constant 26 : i32
    %105 = vector.broadcast %c26_i32 : i32 to vector<16x1xi32>
    %106 = arith.cmpi slt, %29, %105 : vector<16x1xi32>
    %107 = arith.andi %104, %106 : vector<16x1xi1>
    %108 = arith.extui %107 : vector<16x1xi1> to vector<16x1xi32>
    %109 = arith.sitofp %108 : vector<16x1xi32> to vector<16x1xf32>
    %110 = vector.broadcast %109 : vector<16x1xf32> to vector<16x16xf32>
    %111 = arith.mulf %102, %110 : vector<16x16xf32>
    %112 = vector.broadcast %101 : vector<1x16xf32> to vector<16x16xf32>
    %113 = arith.mulf %111, %112 : vector<16x16xf32>
    %114 = arith.addf %100, %113 : vector<16x16xf32>
    %c7 = arith.constant 7 : index
    %c0_26 = arith.constant 0 : index
    %115 = vector.load %arg5[%c7, %c0_26] : memref<33x16xf32, #tpu.memory_space<vmem>>, vector<1x16xf32>
    %c9_i32 = arith.constant 9 : i32
    %116 = tpu.dynamic_rotate %28 by %c9_i32 dim 0 : vector<16x16xf32>, i32 -> vector<16x16xf32>
    %c9_i32_27 = arith.constant 9 : i32
    %117 = vector.broadcast %c9_i32_27 : i32 to vector<16x1xi32>
    %118 = arith.cmpi sge, %29, %117 : vector<16x1xi32>
    %c25_i32 = arith.constant 25 : i32
    %119 = vector.broadcast %c25_i32 : i32 to vector<16x1xi32>
    %120 = arith.cmpi slt, %29, %119 : vector<16x1xi32>
    %121 = arith.andi %118, %120 : vector<16x1xi1>
    %122 = arith.extui %121 : vector<16x1xi1> to vector<16x1xi32>
    %123 = arith.sitofp %122 : vector<16x1xi32> to vector<16x1xf32>
    %124 = vector.broadcast %123 : vector<16x1xf32> to vector<16x16xf32>
    %125 = arith.mulf %116, %124 : vector<16x16xf32>
    %126 = vector.broadcast %115 : vector<1x16xf32> to vector<16x16xf32>
    %127 = arith.mulf %125, %126 : vector<16x16xf32>
    %128 = arith.addf %114, %127 : vector<16x16xf32>
    %c8 = arith.constant 8 : index
    %c0_28 = arith.constant 0 : index
    %129 = vector.load %arg5[%c8, %c0_28] : memref<33x16xf32, #tpu.memory_space<vmem>>, vector<1x16xf32>
    %c8_i32 = arith.constant 8 : i32
    %130 = tpu.dynamic_rotate %28 by %c8_i32 dim 0 : vector<16x16xf32>, i32 -> vector<16x16xf32>
    %c8_i32_29 = arith.constant 8 : i32
    %131 = vector.broadcast %c8_i32_29 : i32 to vector<16x1xi32>
    %132 = arith.cmpi sge, %29, %131 : vector<16x1xi32>
    %c24_i32 = arith.constant 24 : i32
    %133 = vector.broadcast %c24_i32 : i32 to vector<16x1xi32>
    %134 = arith.cmpi slt, %29, %133 : vector<16x1xi32>
    %135 = arith.andi %132, %134 : vector<16x1xi1>
    %136 = arith.extui %135 : vector<16x1xi1> to vector<16x1xi32>
    %137 = arith.sitofp %136 : vector<16x1xi32> to vector<16x1xf32>
    %138 = vector.broadcast %137 : vector<16x1xf32> to vector<16x16xf32>
    %139 = arith.mulf %130, %138 : vector<16x16xf32>
    %140 = vector.broadcast %129 : vector<1x16xf32> to vector<16x16xf32>
    %141 = arith.mulf %139, %140 : vector<16x16xf32>
    %142 = arith.addf %128, %141 : vector<16x16xf32>
    %c9 = arith.constant 9 : index
    %c0_30 = arith.constant 0 : index
    %143 = vector.load %arg5[%c9, %c0_30] : memref<33x16xf32, #tpu.memory_space<vmem>>, vector<1x16xf32>
    %c7_i32 = arith.constant 7 : i32
    %144 = tpu.dynamic_rotate %28 by %c7_i32 dim 0 : vector<16x16xf32>, i32 -> vector<16x16xf32>
    %c7_i32_31 = arith.constant 7 : i32
    %145 = vector.broadcast %c7_i32_31 : i32 to vector<16x1xi32>
    %146 = arith.cmpi sge, %29, %145 : vector<16x1xi32>
    %c23_i32 = arith.constant 23 : i32
    %147 = vector.broadcast %c23_i32 : i32 to vector<16x1xi32>
    %148 = arith.cmpi slt, %29, %147 : vector<16x1xi32>
    %149 = arith.andi %146, %148 : vector<16x1xi1>
    %150 = arith.extui %149 : vector<16x1xi1> to vector<16x1xi32>
    %151 = arith.sitofp %150 : vector<16x1xi32> to vector<16x1xf32>
    %152 = vector.broadcast %151 : vector<16x1xf32> to vector<16x16xf32>
    %153 = arith.mulf %144, %152 : vector<16x16xf32>
    %154 = vector.broadcast %143 : vector<1x16xf32> to vector<16x16xf32>
    %155 = arith.mulf %153, %154 : vector<16x16xf32>
    %156 = arith.addf %142, %155 : vector<16x16xf32>
    %c10 = arith.constant 10 : index
    %c0_32 = arith.constant 0 : index
    %157 = vector.load %arg5[%c10, %c0_32] : memref<33x16xf32, #tpu.memory_space<vmem>>, vector<1x16xf32>
    %c6_i32 = arith.constant 6 : i32
    %158 = tpu.dynamic_rotate %28 by %c6_i32 dim 0 : vector<16x16xf32>, i32 -> vector<16x16xf32>
    %c6_i32_33 = arith.constant 6 : i32
    %159 = vector.broadcast %c6_i32_33 : i32 to vector<16x1xi32>
    %160 = arith.cmpi sge, %29, %159 : vector<16x1xi32>
    %c22_i32 = arith.constant 22 : i32
    %161 = vector.broadcast %c22_i32 : i32 to vector<16x1xi32>
    %162 = arith.cmpi slt, %29, %161 : vector<16x1xi32>
    %163 = arith.andi %160, %162 : vector<16x1xi1>
    %164 = arith.extui %163 : vector<16x1xi1> to vector<16x1xi32>
    %165 = arith.sitofp %164 : vector<16x1xi32> to vector<16x1xf32>
    %166 = vector.broadcast %165 : vector<16x1xf32> to vector<16x16xf32>
    %167 = arith.mulf %158, %166 : vector<16x16xf32>
    %168 = vector.broadcast %157 : vector<1x16xf32> to vector<16x16xf32>
    %169 = arith.mulf %167, %168 : vector<16x16xf32>
    %170 = arith.addf %156, %169 : vector<16x16xf32>
    %c11 = arith.constant 11 : index
    %c0_34 = arith.constant 0 : index
    %171 = vector.load %arg5[%c11, %c0_34] : memref<33x16xf32, #tpu.memory_space<vmem>>, vector<1x16xf32>
    %c5_i32 = arith.constant 5 : i32
    %172 = tpu.dynamic_rotate %28 by %c5_i32 dim 0 : vector<16x16xf32>, i32 -> vector<16x16xf32>
    %c5_i32_35 = arith.constant 5 : i32
    %173 = vector.broadcast %c5_i32_35 : i32 to vector<16x1xi32>
    %174 = arith.cmpi sge, %29, %173 : vector<16x1xi32>
    %c21_i32 = arith.constant 21 : i32
    %175 = vector.broadcast %c21_i32 : i32 to vector<16x1xi32>
    %176 = arith.cmpi slt, %29, %175 : vector<16x1xi32>
    %177 = arith.andi %174, %176 : vector<16x1xi1>
    %178 = arith.extui %177 : vector<16x1xi1> to vector<16x1xi32>
    %179 = arith.sitofp %178 : vector<16x1xi32> to vector<16x1xf32>
    %180 = vector.broadcast %179 : vector<16x1xf32> to vector<16x16xf32>
    %181 = arith.mulf %172, %180 : vector<16x16xf32>
    %182 = vector.broadcast %171 : vector<1x16xf32> to vector<16x16xf32>
    %183 = arith.mulf %181, %182 : vector<16x16xf32>
    %184 = arith.addf %170, %183 : vector<16x16xf32>
    %c12 = arith.constant 12 : index
    %c0_36 = arith.constant 0 : index
    %185 = vector.load %arg5[%c12, %c0_36] : memref<33x16xf32, #tpu.memory_space<vmem>>, vector<1x16xf32>
    %c4_i32 = arith.constant 4 : i32
    %186 = tpu.dynamic_rotate %28 by %c4_i32 dim 0 : vector<16x16xf32>, i32 -> vector<16x16xf32>
    %c4_i32_37 = arith.constant 4 : i32
    %187 = vector.broadcast %c4_i32_37 : i32 to vector<16x1xi32>
    %188 = arith.cmpi sge, %29, %187 : vector<16x1xi32>
    %c20_i32 = arith.constant 20 : i32
    %189 = vector.broadcast %c20_i32 : i32 to vector<16x1xi32>
    %190 = arith.cmpi slt, %29, %189 : vector<16x1xi32>
    %191 = arith.andi %188, %190 : vector<16x1xi1>
    %192 = arith.extui %191 : vector<16x1xi1> to vector<16x1xi32>
    %193 = arith.sitofp %192 : vector<16x1xi32> to vector<16x1xf32>
    %194 = vector.broadcast %193 : vector<16x1xf32> to vector<16x16xf32>
    %195 = arith.mulf %186, %194 : vector<16x16xf32>
    %196 = vector.broadcast %185 : vector<1x16xf32> to vector<16x16xf32>
    %197 = arith.mulf %195, %196 : vector<16x16xf32>
    %198 = arith.addf %184, %197 : vector<16x16xf32>
    %c13 = arith.constant 13 : index
    %c0_38 = arith.constant 0 : index
    %199 = vector.load %arg5[%c13, %c0_38] : memref<33x16xf32, #tpu.memory_space<vmem>>, vector<1x16xf32>
    %c3_i32 = arith.constant 3 : i32
    %200 = tpu.dynamic_rotate %28 by %c3_i32 dim 0 : vector<16x16xf32>, i32 -> vector<16x16xf32>
    %c3_i32_39 = arith.constant 3 : i32
    %201 = vector.broadcast %c3_i32_39 : i32 to vector<16x1xi32>
    %202 = arith.cmpi sge, %29, %201 : vector<16x1xi32>
    %c19_i32 = arith.constant 19 : i32
    %203 = vector.broadcast %c19_i32 : i32 to vector<16x1xi32>
    %204 = arith.cmpi slt, %29, %203 : vector<16x1xi32>
    %205 = arith.andi %202, %204 : vector<16x1xi1>
    %206 = arith.extui %205 : vector<16x1xi1> to vector<16x1xi32>
    %207 = arith.sitofp %206 : vector<16x1xi32> to vector<16x1xf32>
    %208 = vector.broadcast %207 : vector<16x1xf32> to vector<16x16xf32>
    %209 = arith.mulf %200, %208 : vector<16x16xf32>
    %210 = vector.broadcast %199 : vector<1x16xf32> to vector<16x16xf32>
    %211 = arith.mulf %209, %210 : vector<16x16xf32>
    %212 = arith.addf %198, %211 : vector<16x16xf32>
    %c14 = arith.constant 14 : index
    %c0_40 = arith.constant 0 : index
    %213 = vector.load %arg5[%c14, %c0_40] : memref<33x16xf32, #tpu.memory_space<vmem>>, vector<1x16xf32>
    %c2_i32 = arith.constant 2 : i32
    %214 = tpu.dynamic_rotate %28 by %c2_i32 dim 0 : vector<16x16xf32>, i32 -> vector<16x16xf32>
    %c2_i32_41 = arith.constant 2 : i32
    %215 = vector.broadcast %c2_i32_41 : i32 to vector<16x1xi32>
    %216 = arith.cmpi sge, %29, %215 : vector<16x1xi32>
    %c18_i32 = arith.constant 18 : i32
    %217 = vector.broadcast %c18_i32 : i32 to vector<16x1xi32>
    %218 = arith.cmpi slt, %29, %217 : vector<16x1xi32>
    %219 = arith.andi %216, %218 : vector<16x1xi1>
    %220 = arith.extui %219 : vector<16x1xi1> to vector<16x1xi32>
    %221 = arith.sitofp %220 : vector<16x1xi32> to vector<16x1xf32>
    %222 = vector.broadcast %221 : vector<16x1xf32> to vector<16x16xf32>
    %223 = arith.mulf %214, %222 : vector<16x16xf32>
    %224 = vector.broadcast %213 : vector<1x16xf32> to vector<16x16xf32>
    %225 = arith.mulf %223, %224 : vector<16x16xf32>
    %226 = arith.addf %212, %225 : vector<16x16xf32>
    %c15 = arith.constant 15 : index
    %c0_42 = arith.constant 0 : index
    %227 = vector.load %arg5[%c15, %c0_42] : memref<33x16xf32, #tpu.memory_space<vmem>>, vector<1x16xf32>
    %c1_i32 = arith.constant 1 : i32
    %228 = tpu.dynamic_rotate %28 by %c1_i32 dim 0 : vector<16x16xf32>, i32 -> vector<16x16xf32>
    %c1_i32_43 = arith.constant 1 : i32
    %229 = vector.broadcast %c1_i32_43 : i32 to vector<16x1xi32>
    %230 = arith.cmpi sge, %29, %229 : vector<16x1xi32>
    %c17_i32 = arith.constant 17 : i32
    %231 = vector.broadcast %c17_i32 : i32 to vector<16x1xi32>
    %232 = arith.cmpi slt, %29, %231 : vector<16x1xi32>
    %233 = arith.andi %230, %232 : vector<16x1xi1>
    %234 = arith.extui %233 : vector<16x1xi1> to vector<16x1xi32>
    %235 = arith.sitofp %234 : vector<16x1xi32> to vector<16x1xf32>
    %236 = vector.broadcast %235 : vector<16x1xf32> to vector<16x16xf32>
    %237 = arith.mulf %228, %236 : vector<16x16xf32>
    %238 = vector.broadcast %227 : vector<1x16xf32> to vector<16x16xf32>
    %239 = arith.mulf %237, %238 : vector<16x16xf32>
    %240 = arith.addf %226, %239 : vector<16x16xf32>
    %c16 = arith.constant 16 : index
    %c0_44 = arith.constant 0 : index
    %241 = vector.load %arg5[%c16, %c0_44] : memref<33x16xf32, #tpu.memory_space<vmem>>, vector<1x16xf32>
    %242 = vector.broadcast %241 : vector<1x16xf32> to vector<16x16xf32>
    %243 = arith.mulf %28, %242 : vector<16x16xf32>
    %244 = arith.addf %240, %243 : vector<16x16xf32>
    %c17 = arith.constant 17 : index
    %c0_45 = arith.constant 0 : index
    %245 = vector.load %arg5[%c17, %c0_45] : memref<33x16xf32, #tpu.memory_space<vmem>>, vector<1x16xf32>
    %c15_i32_46 = arith.constant 15 : i32
    %246 = tpu.dynamic_rotate %28 by %c15_i32_46 dim 0 : vector<16x16xf32>, i32 -> vector<16x16xf32>
    %c-1_i32 = arith.constant -1 : i32
    %247 = vector.broadcast %c-1_i32 : i32 to vector<16x1xi32>
    %248 = arith.cmpi sge, %29, %247 : vector<16x1xi32>
    %c15_i32_47 = arith.constant 15 : i32
    %249 = vector.broadcast %c15_i32_47 : i32 to vector<16x1xi32>
    %250 = arith.cmpi slt, %29, %249 : vector<16x1xi32>
    %251 = arith.andi %248, %250 : vector<16x1xi1>
    %252 = arith.extui %251 : vector<16x1xi1> to vector<16x1xi32>
    %253 = arith.sitofp %252 : vector<16x1xi32> to vector<16x1xf32>
    %254 = vector.broadcast %253 : vector<16x1xf32> to vector<16x16xf32>
    %255 = arith.mulf %246, %254 : vector<16x16xf32>
    %256 = vector.broadcast %245 : vector<1x16xf32> to vector<16x16xf32>
    %257 = arith.mulf %255, %256 : vector<16x16xf32>
    %258 = arith.addf %244, %257 : vector<16x16xf32>
    %c18 = arith.constant 18 : index
    %c0_48 = arith.constant 0 : index
    %259 = vector.load %arg5[%c18, %c0_48] : memref<33x16xf32, #tpu.memory_space<vmem>>, vector<1x16xf32>
    %c14_i32_49 = arith.constant 14 : i32
    %260 = tpu.dynamic_rotate %28 by %c14_i32_49 dim 0 : vector<16x16xf32>, i32 -> vector<16x16xf32>
    %c-2_i32 = arith.constant -2 : i32
    %261 = vector.broadcast %c-2_i32 : i32 to vector<16x1xi32>
    %262 = arith.cmpi sge, %29, %261 : vector<16x1xi32>
    %c14_i32_50 = arith.constant 14 : i32
    %263 = vector.broadcast %c14_i32_50 : i32 to vector<16x1xi32>
    %264 = arith.cmpi slt, %29, %263 : vector<16x1xi32>
    %265 = arith.andi %262, %264 : vector<16x1xi1>
    %266 = arith.extui %265 : vector<16x1xi1> to vector<16x1xi32>
    %267 = arith.sitofp %266 : vector<16x1xi32> to vector<16x1xf32>
    %268 = vector.broadcast %267 : vector<16x1xf32> to vector<16x16xf32>
    %269 = arith.mulf %260, %268 : vector<16x16xf32>
    %270 = vector.broadcast %259 : vector<1x16xf32> to vector<16x16xf32>
    %271 = arith.mulf %269, %270 : vector<16x16xf32>
    %272 = arith.addf %258, %271 : vector<16x16xf32>
    %c19 = arith.constant 19 : index
    %c0_51 = arith.constant 0 : index
    %273 = vector.load %arg5[%c19, %c0_51] : memref<33x16xf32, #tpu.memory_space<vmem>>, vector<1x16xf32>
    %c13_i32_52 = arith.constant 13 : i32
    %274 = tpu.dynamic_rotate %28 by %c13_i32_52 dim 0 : vector<16x16xf32>, i32 -> vector<16x16xf32>
    %c-3_i32 = arith.constant -3 : i32
    %275 = vector.broadcast %c-3_i32 : i32 to vector<16x1xi32>
    %276 = arith.cmpi sge, %29, %275 : vector<16x1xi32>
    %c13_i32_53 = arith.constant 13 : i32
    %277 = vector.broadcast %c13_i32_53 : i32 to vector<16x1xi32>
    %278 = arith.cmpi slt, %29, %277 : vector<16x1xi32>
    %279 = arith.andi %276, %278 : vector<16x1xi1>
    %280 = arith.extui %279 : vector<16x1xi1> to vector<16x1xi32>
    %281 = arith.sitofp %280 : vector<16x1xi32> to vector<16x1xf32>
    %282 = vector.broadcast %281 : vector<16x1xf32> to vector<16x16xf32>
    %283 = arith.mulf %274, %282 : vector<16x16xf32>
    %284 = vector.broadcast %273 : vector<1x16xf32> to vector<16x16xf32>
    %285 = arith.mulf %283, %284 : vector<16x16xf32>
    %286 = arith.addf %272, %285 : vector<16x16xf32>
    %c20 = arith.constant 20 : index
    %c0_54 = arith.constant 0 : index
    %287 = vector.load %arg5[%c20, %c0_54] : memref<33x16xf32, #tpu.memory_space<vmem>>, vector<1x16xf32>
    %c12_i32_55 = arith.constant 12 : i32
    %288 = tpu.dynamic_rotate %28 by %c12_i32_55 dim 0 : vector<16x16xf32>, i32 -> vector<16x16xf32>
    %c-4_i32 = arith.constant -4 : i32
    %289 = vector.broadcast %c-4_i32 : i32 to vector<16x1xi32>
    %290 = arith.cmpi sge, %29, %289 : vector<16x1xi32>
    %c12_i32_56 = arith.constant 12 : i32
    %291 = vector.broadcast %c12_i32_56 : i32 to vector<16x1xi32>
    %292 = arith.cmpi slt, %29, %291 : vector<16x1xi32>
    %293 = arith.andi %290, %292 : vector<16x1xi1>
    %294 = arith.extui %293 : vector<16x1xi1> to vector<16x1xi32>
    %295 = arith.sitofp %294 : vector<16x1xi32> to vector<16x1xf32>
    %296 = vector.broadcast %295 : vector<16x1xf32> to vector<16x16xf32>
    %297 = arith.mulf %288, %296 : vector<16x16xf32>
    %298 = vector.broadcast %287 : vector<1x16xf32> to vector<16x16xf32>
    %299 = arith.mulf %297, %298 : vector<16x16xf32>
    %300 = arith.addf %286, %299 : vector<16x16xf32>
    %c21 = arith.constant 21 : index
    %c0_57 = arith.constant 0 : index
    %301 = vector.load %arg5[%c21, %c0_57] : memref<33x16xf32, #tpu.memory_space<vmem>>, vector<1x16xf32>
    %c11_i32_58 = arith.constant 11 : i32
    %302 = tpu.dynamic_rotate %28 by %c11_i32_58 dim 0 : vector<16x16xf32>, i32 -> vector<16x16xf32>
    %c-5_i32 = arith.constant -5 : i32
    %303 = vector.broadcast %c-5_i32 : i32 to vector<16x1xi32>
    %304 = arith.cmpi sge, %29, %303 : vector<16x1xi32>
    %c11_i32_59 = arith.constant 11 : i32
    %305 = vector.broadcast %c11_i32_59 : i32 to vector<16x1xi32>
    %306 = arith.cmpi slt, %29, %305 : vector<16x1xi32>
    %307 = arith.andi %304, %306 : vector<16x1xi1>
    %308 = arith.extui %307 : vector<16x1xi1> to vector<16x1xi32>
    %309 = arith.sitofp %308 : vector<16x1xi32> to vector<16x1xf32>
    %310 = vector.broadcast %309 : vector<16x1xf32> to vector<16x16xf32>
    %311 = arith.mulf %302, %310 : vector<16x16xf32>
    %312 = vector.broadcast %301 : vector<1x16xf32> to vector<16x16xf32>
    %313 = arith.mulf %311, %312 : vector<16x16xf32>
    %314 = arith.addf %300, %313 : vector<16x16xf32>
    %c22 = arith.constant 22 : index
    %c0_60 = arith.constant 0 : index
    %315 = vector.load %arg5[%c22, %c0_60] : memref<33x16xf32, #tpu.memory_space<vmem>>, vector<1x16xf32>
    %c10_i32_61 = arith.constant 10 : i32
    %316 = tpu.dynamic_rotate %28 by %c10_i32_61 dim 0 : vector<16x16xf32>, i32 -> vector<16x16xf32>
    %c-6_i32 = arith.constant -6 : i32
    %317 = vector.broadcast %c-6_i32 : i32 to vector<16x1xi32>
    %318 = arith.cmpi sge, %29, %317 : vector<16x1xi32>
    %c10_i32_62 = arith.constant 10 : i32
    %319 = vector.broadcast %c10_i32_62 : i32 to vector<16x1xi32>
    %320 = arith.cmpi slt, %29, %319 : vector<16x1xi32>
    %321 = arith.andi %318, %320 : vector<16x1xi1>
    %322 = arith.extui %321 : vector<16x1xi1> to vector<16x1xi32>
    %323 = arith.sitofp %322 : vector<16x1xi32> to vector<16x1xf32>
    %324 = vector.broadcast %323 : vector<16x1xf32> to vector<16x16xf32>
    %325 = arith.mulf %316, %324 : vector<16x16xf32>
    %326 = vector.broadcast %315 : vector<1x16xf32> to vector<16x16xf32>
    %327 = arith.mulf %325, %326 : vector<16x16xf32>
    %328 = arith.addf %314, %327 : vector<16x16xf32>
    %c23 = arith.constant 23 : index
    %c0_63 = arith.constant 0 : index
    %329 = vector.load %arg5[%c23, %c0_63] : memref<33x16xf32, #tpu.memory_space<vmem>>, vector<1x16xf32>
    %c9_i32_64 = arith.constant 9 : i32
    %330 = tpu.dynamic_rotate %28 by %c9_i32_64 dim 0 : vector<16x16xf32>, i32 -> vector<16x16xf32>
    %c-7_i32 = arith.constant -7 : i32
    %331 = vector.broadcast %c-7_i32 : i32 to vector<16x1xi32>
    %332 = arith.cmpi sge, %29, %331 : vector<16x1xi32>
    %c9_i32_65 = arith.constant 9 : i32
    %333 = vector.broadcast %c9_i32_65 : i32 to vector<16x1xi32>
    %334 = arith.cmpi slt, %29, %333 : vector<16x1xi32>
    %335 = arith.andi %332, %334 : vector<16x1xi1>
    %336 = arith.extui %335 : vector<16x1xi1> to vector<16x1xi32>
    %337 = arith.sitofp %336 : vector<16x1xi32> to vector<16x1xf32>
    %338 = vector.broadcast %337 : vector<16x1xf32> to vector<16x16xf32>
    %339 = arith.mulf %330, %338 : vector<16x16xf32>
    %340 = vector.broadcast %329 : vector<1x16xf32> to vector<16x16xf32>
    %341 = arith.mulf %339, %340 : vector<16x16xf32>
    %342 = arith.addf %328, %341 : vector<16x16xf32>
    %c24 = arith.constant 24 : index
    %c0_66 = arith.constant 0 : index
    %343 = vector.load %arg5[%c24, %c0_66] : memref<33x16xf32, #tpu.memory_space<vmem>>, vector<1x16xf32>
    %c8_i32_67 = arith.constant 8 : i32
    %344 = tpu.dynamic_rotate %28 by %c8_i32_67 dim 0 : vector<16x16xf32>, i32 -> vector<16x16xf32>
    %c-8_i32 = arith.constant -8 : i32
    %345 = vector.broadcast %c-8_i32 : i32 to vector<16x1xi32>
    %346 = arith.cmpi sge, %29, %345 : vector<16x1xi32>
    %c8_i32_68 = arith.constant 8 : i32
    %347 = vector.broadcast %c8_i32_68 : i32 to vector<16x1xi32>
    %348 = arith.cmpi slt, %29, %347 : vector<16x1xi32>
    %349 = arith.andi %346, %348 : vector<16x1xi1>
    %350 = arith.extui %349 : vector<16x1xi1> to vector<16x1xi32>
    %351 = arith.sitofp %350 : vector<16x1xi32> to vector<16x1xf32>
    %352 = vector.broadcast %351 : vector<16x1xf32> to vector<16x16xf32>
    %353 = arith.mulf %344, %352 : vector<16x16xf32>
    %354 = vector.broadcast %343 : vector<1x16xf32> to vector<16x16xf32>
    %355 = arith.mulf %353, %354 : vector<16x16xf32>
    %356 = arith.addf %342, %355 : vector<16x16xf32>
    %c25 = arith.constant 25 : index
    %c0_69 = arith.constant 0 : index
    %357 = vector.load %arg5[%c25, %c0_69] : memref<33x16xf32, #tpu.memory_space<vmem>>, vector<1x16xf32>
    %c7_i32_70 = arith.constant 7 : i32
    %358 = tpu.dynamic_rotate %28 by %c7_i32_70 dim 0 : vector<16x16xf32>, i32 -> vector<16x16xf32>
    %c-9_i32 = arith.constant -9 : i32
    %359 = vector.broadcast %c-9_i32 : i32 to vector<16x1xi32>
    %360 = arith.cmpi sge, %29, %359 : vector<16x1xi32>
    %c7_i32_71 = arith.constant 7 : i32
    %361 = vector.broadcast %c7_i32_71 : i32 to vector<16x1xi32>
    %362 = arith.cmpi slt, %29, %361 : vector<16x1xi32>
    %363 = arith.andi %360, %362 : vector<16x1xi1>
    %364 = arith.extui %363 : vector<16x1xi1> to vector<16x1xi32>
    %365 = arith.sitofp %364 : vector<16x1xi32> to vector<16x1xf32>
    %366 = vector.broadcast %365 : vector<16x1xf32> to vector<16x16xf32>
    %367 = arith.mulf %358, %366 : vector<16x16xf32>
    %368 = vector.broadcast %357 : vector<1x16xf32> to vector<16x16xf32>
    %369 = arith.mulf %367, %368 : vector<16x16xf32>
    %370 = arith.addf %356, %369 : vector<16x16xf32>
    %c26 = arith.constant 26 : index
    %c0_72 = arith.constant 0 : index
    %371 = vector.load %arg5[%c26, %c0_72] : memref<33x16xf32, #tpu.memory_space<vmem>>, vector<1x16xf32>
    %c6_i32_73 = arith.constant 6 : i32
    %372 = tpu.dynamic_rotate %28 by %c6_i32_73 dim 0 : vector<16x16xf32>, i32 -> vector<16x16xf32>
    %c-10_i32 = arith.constant -10 : i32
    %373 = vector.broadcast %c-10_i32 : i32 to vector<16x1xi32>
    %374 = arith.cmpi sge, %29, %373 : vector<16x1xi32>
    %c6_i32_74 = arith.constant 6 : i32
    %375 = vector.broadcast %c6_i32_74 : i32 to vector<16x1xi32>
    %376 = arith.cmpi slt, %29, %375 : vector<16x1xi32>
    %377 = arith.andi %374, %376 : vector<16x1xi1>
    %378 = arith.extui %377 : vector<16x1xi1> to vector<16x1xi32>
    %379 = arith.sitofp %378 : vector<16x1xi32> to vector<16x1xf32>
    %380 = vector.broadcast %379 : vector<16x1xf32> to vector<16x16xf32>
    %381 = arith.mulf %372, %380 : vector<16x16xf32>
    %382 = vector.broadcast %371 : vector<1x16xf32> to vector<16x16xf32>
    %383 = arith.mulf %381, %382 : vector<16x16xf32>
    %384 = arith.addf %370, %383 : vector<16x16xf32>
    %c27 = arith.constant 27 : index
    %c0_75 = arith.constant 0 : index
    %385 = vector.load %arg5[%c27, %c0_75] : memref<33x16xf32, #tpu.memory_space<vmem>>, vector<1x16xf32>
    %c5_i32_76 = arith.constant 5 : i32
    %386 = tpu.dynamic_rotate %28 by %c5_i32_76 dim 0 : vector<16x16xf32>, i32 -> vector<16x16xf32>
    %c-11_i32 = arith.constant -11 : i32
    %387 = vector.broadcast %c-11_i32 : i32 to vector<16x1xi32>
    %388 = arith.cmpi sge, %29, %387 : vector<16x1xi32>
    %c5_i32_77 = arith.constant 5 : i32
    %389 = vector.broadcast %c5_i32_77 : i32 to vector<16x1xi32>
    %390 = arith.cmpi slt, %29, %389 : vector<16x1xi32>
    %391 = arith.andi %388, %390 : vector<16x1xi1>
    %392 = arith.extui %391 : vector<16x1xi1> to vector<16x1xi32>
    %393 = arith.sitofp %392 : vector<16x1xi32> to vector<16x1xf32>
    %394 = vector.broadcast %393 : vector<16x1xf32> to vector<16x16xf32>
    %395 = arith.mulf %386, %394 : vector<16x16xf32>
    %396 = vector.broadcast %385 : vector<1x16xf32> to vector<16x16xf32>
    %397 = arith.mulf %395, %396 : vector<16x16xf32>
    %398 = arith.addf %384, %397 : vector<16x16xf32>
    %c28 = arith.constant 28 : index
    %c0_78 = arith.constant 0 : index
    %399 = vector.load %arg5[%c28, %c0_78] : memref<33x16xf32, #tpu.memory_space<vmem>>, vector<1x16xf32>
    %c4_i32_79 = arith.constant 4 : i32
    %400 = tpu.dynamic_rotate %28 by %c4_i32_79 dim 0 : vector<16x16xf32>, i32 -> vector<16x16xf32>
    %c-12_i32 = arith.constant -12 : i32
    %401 = vector.broadcast %c-12_i32 : i32 to vector<16x1xi32>
    %402 = arith.cmpi sge, %29, %401 : vector<16x1xi32>
    %c4_i32_80 = arith.constant 4 : i32
    %403 = vector.broadcast %c4_i32_80 : i32 to vector<16x1xi32>
    %404 = arith.cmpi slt, %29, %403 : vector<16x1xi32>
    %405 = arith.andi %402, %404 : vector<16x1xi1>
    %406 = arith.extui %405 : vector<16x1xi1> to vector<16x1xi32>
    %407 = arith.sitofp %406 : vector<16x1xi32> to vector<16x1xf32>
    %408 = vector.broadcast %407 : vector<16x1xf32> to vector<16x16xf32>
    %409 = arith.mulf %400, %408 : vector<16x16xf32>
    %410 = vector.broadcast %399 : vector<1x16xf32> to vector<16x16xf32>
    %411 = arith.mulf %409, %410 : vector<16x16xf32>
    %412 = arith.addf %398, %411 : vector<16x16xf32>
    %c29 = arith.constant 29 : index
    %c0_81 = arith.constant 0 : index
    %413 = vector.load %arg5[%c29, %c0_81] : memref<33x16xf32, #tpu.memory_space<vmem>>, vector<1x16xf32>
    %c3_i32_82 = arith.constant 3 : i32
    %414 = tpu.dynamic_rotate %28 by %c3_i32_82 dim 0 : vector<16x16xf32>, i32 -> vector<16x16xf32>
    %c-13_i32 = arith.constant -13 : i32
    %415 = vector.broadcast %c-13_i32 : i32 to vector<16x1xi32>
    %416 = arith.cmpi sge, %29, %415 : vector<16x1xi32>
    %c3_i32_83 = arith.constant 3 : i32
    %417 = vector.broadcast %c3_i32_83 : i32 to vector<16x1xi32>
    %418 = arith.cmpi slt, %29, %417 : vector<16x1xi32>
    %419 = arith.andi %416, %418 : vector<16x1xi1>
    %420 = arith.extui %419 : vector<16x1xi1> to vector<16x1xi32>
    %421 = arith.sitofp %420 : vector<16x1xi32> to vector<16x1xf32>
    %422 = vector.broadcast %421 : vector<16x1xf32> to vector<16x16xf32>
    %423 = arith.mulf %414, %422 : vector<16x16xf32>
    %424 = vector.broadcast %413 : vector<1x16xf32> to vector<16x16xf32>
    %425 = arith.mulf %423, %424 : vector<16x16xf32>
    %426 = arith.addf %412, %425 : vector<16x16xf32>
    %c30 = arith.constant 30 : index
    %c0_84 = arith.constant 0 : index
    %427 = vector.load %arg5[%c30, %c0_84] : memref<33x16xf32, #tpu.memory_space<vmem>>, vector<1x16xf32>
    %c2_i32_85 = arith.constant 2 : i32
    %428 = tpu.dynamic_rotate %28 by %c2_i32_85 dim 0 : vector<16x16xf32>, i32 -> vector<16x16xf32>
    %c-14_i32 = arith.constant -14 : i32
    %429 = vector.broadcast %c-14_i32 : i32 to vector<16x1xi32>
    %430 = arith.cmpi sge, %29, %429 : vector<16x1xi32>
    %c2_i32_86 = arith.constant 2 : i32
    %431 = vector.broadcast %c2_i32_86 : i32 to vector<16x1xi32>
    %432 = arith.cmpi slt, %29, %431 : vector<16x1xi32>
    %433 = arith.andi %430, %432 : vector<16x1xi1>
    %434 = arith.extui %433 : vector<16x1xi1> to vector<16x1xi32>
    %435 = arith.sitofp %434 : vector<16x1xi32> to vector<16x1xf32>
    %436 = vector.broadcast %435 : vector<16x1xf32> to vector<16x16xf32>
    %437 = arith.mulf %428, %436 : vector<16x16xf32>
    %438 = vector.broadcast %427 : vector<1x16xf32> to vector<16x16xf32>
    %439 = arith.mulf %437, %438 : vector<16x16xf32>
    %440 = arith.addf %426, %439 : vector<16x16xf32>
    %c31 = arith.constant 31 : index
    %c0_87 = arith.constant 0 : index
    %441 = vector.load %arg5[%c31, %c0_87] : memref<33x16xf32, #tpu.memory_space<vmem>>, vector<1x16xf32>
    %c1_i32_88 = arith.constant 1 : i32
    %442 = tpu.dynamic_rotate %28 by %c1_i32_88 dim 0 : vector<16x16xf32>, i32 -> vector<16x16xf32>
    %c-15_i32 = arith.constant -15 : i32
    %443 = vector.broadcast %c-15_i32 : i32 to vector<16x1xi32>
    %444 = arith.cmpi sge, %29, %443 : vector<16x1xi32>
    %c1_i32_89 = arith.constant 1 : i32
    %445 = vector.broadcast %c1_i32_89 : i32 to vector<16x1xi32>
    %446 = arith.cmpi slt, %29, %445 : vector<16x1xi32>
    %447 = arith.andi %444, %446 : vector<16x1xi1>
    %448 = arith.extui %447 : vector<16x1xi1> to vector<16x1xi32>
    %449 = arith.sitofp %448 : vector<16x1xi32> to vector<16x1xf32>
    %450 = vector.broadcast %449 : vector<16x1xf32> to vector<16x16xf32>
    %451 = arith.mulf %442, %450 : vector<16x16xf32>
    %452 = vector.broadcast %441 : vector<1x16xf32> to vector<16x16xf32>
    %453 = arith.mulf %451, %452 : vector<16x16xf32>
    %454 = arith.addf %440, %453 : vector<16x16xf32>
    %455 = vector.extract_strided_slice %26 {offsets = [0, 0], sizes = [16, 8], strides = [1, 1]} : vector<16x16xf32> to vector<16x8xf32>
    %456 = vector.extract_strided_slice %27 {offsets = [0, 0], sizes = [16, 8], strides = [1, 1]} : vector<16x16xf32> to vector<16x8xf32>
    %457 = vector.extract_strided_slice %28 {offsets = [0, 0], sizes = [16, 8], strides = [1, 1]} : vector<16x16xf32> to vector<16x8xf32>
    %458 = vector.extract_strided_slice %455 {offsets = [0, 0], sizes = [8, 8], strides = [1, 1]} : vector<16x8xf32> to vector<8x8xf32>
    %cst_90 = arith.constant dense<0.000000e+00> : vector<8x16xf32>
    %459 = tpu.matmul %458, %456, %cst_90 {dimension_numbers = #tpu.dot_dimension_numbers<[1], [1], [0], [0], [0, 0, 1, 0], [], []>} : vector<8x8xf32>, vector<16x8xf32>, vector<8x16xf32> -> vector<8x16xf32>
    %cst_91 = arith.constant dense<0xFF800000> : vector<8xf32>
    %460 = vector.multi_reduction <maximumf>, %459, %cst_91 [1] : vector<8x16xf32> to vector<8xf32>
    %461 = vector.shape_cast %460 : vector<8xf32> to vector<8x1xf32>
    %462 = vector.broadcast %461 : vector<8x1xf32> to vector<8x16xf32>
    %463 = arith.subf %459, %462 : vector<8x16xf32>
    %464 = math.exp %463 : vector<8x16xf32>
    %cst_92 = arith.constant dense<0.000000e+00> : vector<8xf32>
    %465 = vector.multi_reduction <add>, %464, %cst_92 [1] : vector<8x16xf32> to vector<8xf32>
    %466 = vector.shape_cast %465 : vector<8xf32> to vector<8x1xf32>
    %467 = tpu.reciprocal %466 : vector<8x1xf32> -> vector<8x1xf32>
    %468 = vector.broadcast %467 : vector<8x1xf32> to vector<8x16xf32>
    %469 = arith.mulf %464, %468 : vector<8x16xf32>
    %cst_93 = arith.constant dense<0.000000e+00> : vector<8x8xf32>
    %470 = tpu.matmul %469, %457, %cst_93 {dimension_numbers = #tpu.dot_dimension_numbers<[1], [0], [0], [1], [0, 0, 1, 1], [], []>} : vector<8x16xf32>, vector<16x8xf32>, vector<8x8xf32> -> vector<8x8xf32>
    %471 = vector.extract_strided_slice %455 {offsets = [8, 0], sizes = [8, 8], strides = [1, 1]} : vector<16x8xf32> to vector<8x8xf32>
    %472 = vector.extract_strided_slice %456 {offsets = [0, 0], sizes = [8, 8], strides = [1, 1]} : vector<16x8xf32> to vector<8x8xf32>
    %cst_94 = arith.constant dense<0.000000e+00> : vector<8x8xf32>
    %473 = tpu.matmul %471, %472, %cst_94 {dimension_numbers = #tpu.dot_dimension_numbers<[1], [1], [0], [0], [0, 0, 1, 0], [], []>} : vector<8x8xf32>, vector<8x8xf32>, vector<8x8xf32> -> vector<8x8xf32>
    %cst_95 = arith.constant dense<0xFF800000> : vector<8xf32>
    %474 = vector.multi_reduction <maximumf>, %473, %cst_95 [1] : vector<8x8xf32> to vector<8xf32>
    %475 = vector.shape_cast %474 : vector<8xf32> to vector<8x1xf32>
    %476 = vector.broadcast %475 : vector<8x1xf32> to vector<8x8xf32>
    %477 = arith.subf %473, %476 : vector<8x8xf32>
    %478 = math.exp %477 : vector<8x8xf32>
    %cst_96 = arith.constant dense<0.000000e+00> : vector<8xf32>
    %479 = vector.multi_reduction <add>, %478, %cst_96 [1] : vector<8x8xf32> to vector<8xf32>
    %480 = vector.shape_cast %479 : vector<8xf32> to vector<8x1xf32>
    %481 = tpu.reciprocal %480 : vector<8x1xf32> -> vector<8x1xf32>
    %482 = vector.broadcast %481 : vector<8x1xf32> to vector<8x8xf32>
    %483 = arith.mulf %478, %482 : vector<8x8xf32>
    %484 = vector.extract_strided_slice %457 {offsets = [0, 0], sizes = [8, 8], strides = [1, 1]} : vector<16x8xf32> to vector<8x8xf32>
    %cst_97 = arith.constant dense<0.000000e+00> : vector<8x8xf32>
    %485 = tpu.matmul %483, %484, %cst_97 {dimension_numbers = #tpu.dot_dimension_numbers<[1], [0], [0], [1], [0, 0, 1, 1], [], []>} : vector<8x8xf32>, vector<8x8xf32>, vector<8x8xf32> -> vector<8x8xf32>
    %486 = vector.extract_strided_slice %26 {offsets = [0, 8], sizes = [16, 8], strides = [1, 1]} : vector<16x16xf32> to vector<16x8xf32>
    %487 = vector.extract_strided_slice %27 {offsets = [0, 8], sizes = [16, 8], strides = [1, 1]} : vector<16x16xf32> to vector<16x8xf32>
    %488 = vector.extract_strided_slice %28 {offsets = [0, 8], sizes = [16, 8], strides = [1, 1]} : vector<16x16xf32> to vector<16x8xf32>
    %489 = vector.extract_strided_slice %486 {offsets = [0, 0], sizes = [8, 8], strides = [1, 1]} : vector<16x8xf32> to vector<8x8xf32>
    %cst_98 = arith.constant dense<0.000000e+00> : vector<8x16xf32>
    %490 = tpu.matmul %489, %487, %cst_98 {dimension_numbers = #tpu.dot_dimension_numbers<[1], [1], [0], [0], [0, 0, 1, 0], [], []>} : vector<8x8xf32>, vector<16x8xf32>, vector<8x16xf32> -> vector<8x16xf32>
    %cst_99 = arith.constant dense<0xFF800000> : vector<8xf32>
    %491 = vector.multi_reduction <maximumf>, %490, %cst_99 [1] : vector<8x16xf32> to vector<8xf32>
    %492 = vector.shape_cast %491 : vector<8xf32> to vector<8x1xf32>
    %493 = vector.broadcast %492 : vector<8x1xf32> to vector<8x16xf32>
    %494 = arith.subf %490, %493 : vector<8x16xf32>
    %495 = math.exp %494 : vector<8x16xf32>
    %cst_100 = arith.constant dense<0.000000e+00> : vector<8xf32>
    %496 = vector.multi_reduction <add>, %495, %cst_100 [1] : vector<8x16xf32> to vector<8xf32>
    %497 = vector.shape_cast %496 : vector<8xf32> to vector<8x1xf32>
    %498 = tpu.reciprocal %497 : vector<8x1xf32> -> vector<8x1xf32>
    %499 = vector.broadcast %498 : vector<8x1xf32> to vector<8x16xf32>
    %500 = arith.mulf %495, %499 : vector<8x16xf32>
    %cst_101 = arith.constant dense<0.000000e+00> : vector<8x8xf32>
    %501 = tpu.matmul %500, %488, %cst_101 {dimension_numbers = #tpu.dot_dimension_numbers<[1], [0], [0], [1], [0, 0, 1, 1], [], []>} : vector<8x16xf32>, vector<16x8xf32>, vector<8x8xf32> -> vector<8x8xf32>
    %502 = vector.extract_strided_slice %486 {offsets = [8, 0], sizes = [8, 8], strides = [1, 1]} : vector<16x8xf32> to vector<8x8xf32>
    %503 = vector.extract_strided_slice %487 {offsets = [0, 0], sizes = [8, 8], strides = [1, 1]} : vector<16x8xf32> to vector<8x8xf32>
    %cst_102 = arith.constant dense<0.000000e+00> : vector<8x8xf32>
    %504 = tpu.matmul %502, %503, %cst_102 {dimension_numbers = #tpu.dot_dimension_numbers<[1], [1], [0], [0], [0, 0, 1, 0], [], []>} : vector<8x8xf32>, vector<8x8xf32>, vector<8x8xf32> -> vector<8x8xf32>
    %cst_103 = arith.constant dense<0xFF800000> : vector<8xf32>
    %505 = vector.multi_reduction <maximumf>, %504, %cst_103 [1] : vector<8x8xf32> to vector<8xf32>
    %506 = vector.shape_cast %505 : vector<8xf32> to vector<8x1xf32>
    %507 = vector.broadcast %506 : vector<8x1xf32> to vector<8x8xf32>
    %508 = arith.subf %504, %507 : vector<8x8xf32>
    %509 = math.exp %508 : vector<8x8xf32>
    %cst_104 = arith.constant dense<0.000000e+00> : vector<8xf32>
    %510 = vector.multi_reduction <add>, %509, %cst_104 [1] : vector<8x8xf32> to vector<8xf32>
    %511 = vector.shape_cast %510 : vector<8xf32> to vector<8x1xf32>
    %512 = tpu.reciprocal %511 : vector<8x1xf32> -> vector<8x1xf32>
    %513 = vector.broadcast %512 : vector<8x1xf32> to vector<8x8xf32>
    %514 = arith.mulf %509, %513 : vector<8x8xf32>
    %515 = vector.extract_strided_slice %488 {offsets = [0, 0], sizes = [8, 8], strides = [1, 1]} : vector<16x8xf32> to vector<8x8xf32>
    %cst_105 = arith.constant dense<0.000000e+00> : vector<8x8xf32>
    %516 = tpu.matmul %514, %515, %cst_105 {dimension_numbers = #tpu.dot_dimension_numbers<[1], [0], [0], [1], [0, 0, 1, 1], [], []>} : vector<8x8xf32>, vector<8x8xf32>, vector<8x8xf32> -> vector<8x8xf32>
    %517 = tpu.concatenate %470, %501 in 1 : vector<8x8xf32>, vector<8x8xf32> -> vector<8x16xf32>
    %518 = tpu.concatenate %485, %516 in 1 : vector<8x8xf32>, vector<8x8xf32> -> vector<8x16xf32>
    %519 = vector.extract_strided_slice %454 {offsets = [0, 0], sizes = [8, 16], strides = [1, 1]} : vector<16x16xf32> to vector<8x16xf32>
    %520 = arith.addf %517, %519 : vector<8x16xf32>
    %c0_106 = arith.constant 0 : index
    %c0_107 = arith.constant 0 : index
    %c0_108 = arith.constant 0 : index
    %521 = vector.load %arg6[%c0_106, %c0_107, %c0_108] : memref<1x16x16xf32, #tpu.memory_space<vmem>>, vector<1x8x16xf32>
    %522 = vector.shape_cast %521 : vector<1x8x16xf32> to vector<8x16xf32>
    %523 = vector.shape_cast %520 : vector<8x16xf32> to vector<1x8x16xf32>
    tpu.vector_store %arg6[%c0_106, %c0_107, %c0_108], %523 {strides = array<i32>} : memref<1x16x16xf32, #tpu.memory_space<vmem>>, vector<1x8x16xf32>,
    %524 = vector.extract_strided_slice %454 {offsets = [8, 0], sizes = [8, 16], strides = [1, 1]} : vector<16x16xf32> to vector<8x16xf32>
    %525 = arith.addf %518, %524 : vector<8x16xf32>
    %c0_109 = arith.constant 0 : index
    %c8_110 = arith.constant 8 : index
    %c0_111 = arith.constant 0 : index
    %526 = vector.load %arg6[%c0_109, %c8_110, %c0_111] : memref<1x16x16xf32, #tpu.memory_space<vmem>>, vector<1x8x16xf32>
    %527 = vector.shape_cast %526 : vector<1x8x16xf32> to vector<8x16xf32>
    %528 = vector.shape_cast %525 : vector<8x16xf32> to vector<1x8x16xf32>
    tpu.vector_store %arg6[%c0_109, %c8_110, %c0_111], %528 {strides = array<i32>} : memref<1x16x16xf32, #tpu.memory_space<vmem>>, vector<1x8x16xf32>,
    return
  }
  func.func @transform_0(%arg0: i32) -> (i32, i32, i32) {
    %c0_i32 = arith.constant 0 : i32
    %c0_i32_0 = arith.constant 0 : i32
    %c0_i32_1 = arith.constant 0 : i32
    return %arg0, %c0_i32, %c0_i32_0 : i32, i32, i32
  }
  func.func @transform_1(%arg0: i32) -> (i32, i32) {
    %c0_i32 = arith.constant 0 : i32
    %c0_i32_0 = arith.constant 0 : i32
    %c0_i32_1 = arith.constant 0 : i32
    return %c0_i32, %c0_i32_0 : i32, i32
  }
  func.func @transform_2(%arg0: i32) -> (i32, i32) {
    %c0_i32 = arith.constant 0 : i32
    %c0_i32_0 = arith.constant 0 : i32
    %c0_i32_1 = arith.constant 0 : i32
    return %c0_i32, %c0_i32_0 : i32, i32
  }
  func.func @transform_3(%arg0: i32) -> (i32, i32) {
    %c0_i32 = arith.constant 0 : i32
    %c0_i32_0 = arith.constant 0 : i32
    %c0_i32_1 = arith.constant 0 : i32
    return %c0_i32, %c0_i32_0 : i32, i32
  }
  func.func @transform_4(%arg0: i32) -> (i32, i32) {
    %c0_i32 = arith.constant 0 : i32
    %c0_i32_0 = arith.constant 0 : i32
    %c0_i32_1 = arith.constant 0 : i32
    return %c0_i32, %c0_i32_0 : i32, i32
  }
  func.func @transform_5(%arg0: i32) -> (i32, i32, i32) {
    %c0_i32 = arith.constant 0 : i32
    %c0_i32_0 = arith.constant 0 : i32
    %c0_i32_1 = arith.constant 0 : i32
    return %arg0, %c0_i32, %c0_i32_0 : i32, i32, i32
  }
}

</mosaic_0001>

<llo_original>
// kernel: tpu_custom_call.1
$region0: #{tpu_custom_call.1}
  #allocation0 [shape = 'u32[]', space=smem, size = 0x4, offset = 0x4, fixed_abs, tag = 'smem constant byte address 0x4 - core index']
  #allocation1 [shape = 'u32[144,128]{1,0:T(1,128)}', space=vmem, size = 0x12000, scoped, tag = 'internal scratch']
  %s0 = inlined_call_operand.vmem [shape: f32[2,16,32], index: 0, kind: input, shape index: {}]
  %s1 = inlined_call_operand.vmem [shape: f32[1,32], index: 1, kind: input, shape index: {}]
  %s2 = inlined_call_operand.vmem [shape: f32[1,32], index: 2, kind: input, shape index: {}]
  %s3 = inlined_call_operand.vmem [shape: f32[32,48], index: 3, kind: input, shape index: {}]
  %s4 = inlined_call_operand.vmem [shape: f32[33,16], index: 4, kind: input, shape index: {}]
  %s5 = inlined_call_operand.hbm [shape: f32[2,16,16], index: 5, kind: output, shape index: {}]
  %s6 = sld [smem:[#allocation0]]
  $region53: #{tpu_custom_call.1} parent=0
    _
  %s8 = ssub.s32 1, %s6
  %s9 = scalar_select 0, %s8, %s6
  $region1: #{tpu_custom_call.1} parent=0
    #allocation2 [shape = 'u8[16384]{0}', space=vmem, size = 0x4000, scoped, tag = 'output window, operand 0']
    #allocation3 [shape = 's32[2]{0}', space=sflag, size = 0x8, scoped, tag = 'scoped memory for tpu_custom_call.1']
    %10 = vsyncpa [#allocation3], 0
    %s11 = scalar_lea.sflag [#allocation3], 1
    %12 = vsyncpa %s11, 0
    loop: start=0, step=1, limit=4
    $region2: #{tpu_custom_call.1} parent=1 // loop_pre_header
      _
    $region3: #{tpu_custom_call.1} parent=1 // loop_header
      %s14 = sphi 0, %s18
      %p15 = scmp.ge.s32.totalorder %s14, 4
      %s24 = sphi 0, %s26
      %s27 = sphi 0, %s24
      %s28 = sphi 0, %s27
      %s44 = sphi 0, %s28
      %s48 = sphi 0, %s48
      %s50 = sphi 0, %s48
      %s51 = sphi 0, %s50
      %s65 = sphi 0, %s51
      %s69 = sphi 0, %s69
      %s71 = sphi 0, %s69
      %s72 = sphi 0, %s71
      %s86 = sphi 0, %s72
      %s90 = sphi 0, %s90
      %s92 = sphi 0, %s90
      %s93 = sphi 0, %s92
      %s107 = sphi 0, %s93
      %s111 = sphi 0, %s111
      %s113 = sphi 0, %s111
      %s114 = sphi 0, %s113
      %s128 = sphi 0, %s114
      %s134 = sphi 0, %s136
      %s137 = sphi 0, %s134
      %s138 = sphi 0, %s137
      %s154 = sphi 0, %s138
    $region4: #{tpu_custom_call.1} parent=1 // loop_header_branch
      %17 = sbr.rel (%p15) target = $region8
    $region5: #{tpu_custom_call.1} parent=1 // loop_body
      %s19 = ssub.s32 %s14, 1
      %s20 = ssub.s32 %s14, 2
      %s21 = sadd.s32 %s14, 1
      %s22 = ssub.s32 %s14, %s21
      %p23 = scmp.eq.s32.totalorder %s22, 0
      %s25 = sadd.s32 %s24, 1
      %s26 = scalar_select %p23, %s24, %s25
      %p29 = pneg %p23
      %p30 = scmp.eq.s32.totalorder %s14, 1
      %p31 = por %p29, %p30
      %p32 = scmp.ne.s32.totalorder %s24, %s27
      %p33 = scmp.eq.s32.totalorder %s14, 0
      %p34 = por %p32, %p33
      %p35 = scmp.ne.s32.totalorder %s24, %s27
      %p36 = scmp.eq.s32.totalorder %s19, 1
      %p37 = por %p35, %p36
      %p38 = scmp.ne.s32.totalorder %s27, %s28
      %p39 = scmp.eq.s32.totalorder %s19, 0
      %p40 = por %p38, %p39
      %p41 = scmp.ne.s32.totalorder %s27, %s28
      %p42 = scmp.eq.s32.totalorder %s20, 1
      %p43 = por %p41, %p42
      %p45 = scmp.ne.s32.totalorder %s28, %s44
      %p46 = scmp.eq.s32.totalorder %s20, 0
      %p47 = por %p45, %p46
      %s49 = sadd.s32 %s48, 1
      %p52 = scmp.eq.s32.totalorder %s14, 1
      %p53 = scmp.ne.s32.totalorder %s48, %s50
      %p54 = scmp.eq.s32.totalorder %s14, 0
      %p55 = por %p53, %p54
      %p56 = scmp.ne.s32.totalorder %s48, %s50
      %p57 = scmp.eq.s32.totalorder %s19, 1
      %p58 = por %p56, %p57
      %p59 = scmp.ne.s32.totalorder %s50, %s51
      %p60 = scmp.eq.s32.totalorder %s19, 0
      %p61 = por %p59, %p60
      %p62 = scmp.ne.s32.totalorder %s50, %s51
      %p63 = scmp.eq.s32.totalorder %s20, 1
      %p64 = por %p62, %p63
      %p66 = scmp.ne.s32.totalorder %s51, %s65
      %p67 = scmp.eq.s32.totalorder %s20, 0
      %p68 = por %p66, %p67
      %s70 = sadd.s32 %s69, 1
      %p73 = scmp.eq.s32.totalorder %s14, 1
      %p74 = scmp.ne.s32.totalorder %s69, %s71
      %p75 = scmp.eq.s32.totalorder %s14, 0
      %p76 = por %p74, %p75
      %p77 = scmp.ne.s32.totalorder %s69, %s71
      %p78 = scmp.eq.s32.totalorder %s19, 1
      %p79 = por %p77, %p78
      %p80 = scmp.ne.s32.totalorder %s71, %s72
      %p81 = scmp.eq.s32.totalorder %s19, 0
      %p82 = por %p80, %p81
      %p83 = scmp.ne.s32.totalorder %s71, %s72
      %p84 = scmp.eq.s32.totalorder %s20, 1
      %p85 = por %p83, %p84
      %p87 = scmp.ne.s32.totalorder %s72, %s86
      %p88 = scmp.eq.s32.totalorder %s20, 0
      %p89 = por %p87, %p88
      %s91 = sadd.s32 %s90, 1
      %p94 = scmp.eq.s32.totalorder %s14, 1
      %p95 = scmp.ne.s32.totalorder %s90, %s92
      %p96 = scmp.eq.s32.totalorder %s14, 0
      %p97 = por %p95, %p96
      %p98 = scmp.ne.s32.totalorder %s90, %s92
      %p99 = scmp.eq.s32.totalorder %s19, 1
      %p100 = por %p98, %p99
      %p101 = scmp.ne.s32.totalorder %s92, %s93
      %p102 = scmp.eq.s32.totalorder %s19, 0
      %p103 = por %p101, %p102
      %p104 = scmp.ne.s32.totalorder %s92, %s93
      %p105 = scmp.eq.s32.totalorder %s20, 1
      %p106 = por %p104, %p105
      %p108 = scmp.ne.s32.totalorder %s93, %s107
      %p109 = scmp.eq.s32.totalorder %s20, 0
      %p110 = por %p108, %p109
      %s112 = sadd.s32 %s111, 1
      %p115 = scmp.eq.s32.totalorder %s14, 1
      %p116 = scmp.ne.s32.totalorder %s111, %s113
      %p117 = scmp.eq.s32.totalorder %s14, 0
      %p118 = por %p116, %p117
      %p119 = scmp.ne.s32.totalorder %s111, %s113
      %p120 = scmp.eq.s32.totalorder %s19, 1
      %p121 = por %p119, %p120
      %p122 = scmp.ne.s32.totalorder %s113, %s114
      %p123 = scmp.eq.s32.totalorder %s19, 0
      %p124 = por %p122, %p123
      %p125 = scmp.ne.s32.totalorder %s113, %s114
      %p126 = scmp.eq.s32.totalorder %s20, 1
      %p127 = por %p125, %p126
      %p129 = scmp.ne.s32.totalorder %s114, %s128
      %p130 = scmp.eq.s32.totalorder %s20, 0
      %p131 = por %p129, %p130
      %s132 = ssub.s32 %s14, %s21
      %p133 = scmp.eq.s32.totalorder %s132, 0
      %s135 = sadd.s32 %s134, 1
      %s136 = scalar_select %p133, %s134, %s135
      %p139 = pneg %p133
      %p140 = scmp.eq.s32.totalorder %s14, 1
      %p141 = por %p139, %p140
      %p142 = scmp.ne.s32.totalorder %s134, %s137
      %p143 = scmp.eq.s32.totalorder %s14, 0
      %p144 = por %p142, %p143
      %p145 = scmp.ne.s32.totalorder %s134, %s137
      %p146 = scmp.eq.s32.totalorder %s19, 1
      %p147 = por %p145, %p146
      %p148 = scmp.ne.s32.totalorder %s137, %s138
      %p149 = scmp.eq.s32.totalorder %s19, 0
      %p150 = por %p148, %p149
      %p151 = scmp.ne.s32.totalorder %s137, %s138
      %p152 = scmp.eq.s32.totalorder %s20, 1
      %p153 = por %p151, %p152
      %p155 = scmp.ne.s32.totalorder %s138, %s154
      %p156 = scmp.eq.s32.totalorder %s20, 0
      %p157 = por %p155, %p156
      %p158 = scmp.le.s32.totalorder 1, %s14
      %p159 = scmp.lt.s32.totalorder %s14, 3
      %p160 = pnand %p158, %p159
      %p161 = pneg %p160
      // Predicated region
      $region9: #{tpu_custom_call.1} parent=5 // pred_check
        _
      $region10: #{tpu_custom_call.1} parent=5 // pred_check_branch
        %163 = sbr.rel (%p160) target = $region12
      $region11: #{tpu_custom_call.1} parent=5 // pred_region
        %s164 = ssub.s32 %s14, 1
        // Predicated region
        $region13: #{tpu_custom_call.1} parent=11 // pred_check
          %p165 = pneg %p61
        $region14: #{tpu_custom_call.1} parent=11 // pred_check_branch
          %167 = sbr.rel (%p165) target = $region16
        $region15: #{tpu_custom_call.1} parent=11 // pred_region
          _
        $region16: #{tpu_custom_call.1} parent=11 // pred_fallthru
          _
        // Predicated region
        $region17: #{tpu_custom_call.1} parent=11 // pred_check
          %p168 = pneg %p82
        $region18: #{tpu_custom_call.1} parent=11 // pred_check_branch
          %170 = sbr.rel (%p168) target = $region20
        $region19: #{tpu_custom_call.1} parent=11 // pred_region
          _
        $region20: #{tpu_custom_call.1} parent=11 // pred_fallthru
          _
        // Predicated region
        $region21: #{tpu_custom_call.1} parent=11 // pred_check
          %p171 = pneg %p103
        $region22: #{tpu_custom_call.1} parent=11 // pred_check_branch
          %173 = sbr.rel (%p171) target = $region24
        $region23: #{tpu_custom_call.1} parent=11 // pred_region
          _
        $region24: #{tpu_custom_call.1} parent=11 // pred_fallthru
          _
        // Predicated region
        $region25: #{tpu_custom_call.1} parent=11 // pred_check
          %p174 = pneg %p124
        $region26: #{tpu_custom_call.1} parent=11 // pred_check_branch
          %176 = sbr.rel (%p174) target = $region28
        $region27: #{tpu_custom_call.1} parent=11 // pred_region
          _
        $region28: #{tpu_custom_call.1} parent=11 // pred_fallthru
          _
      $region12: #{tpu_custom_call.1} parent=5 // pred_fallthru
        _
      %p177 = scmp.lt.s32.totalorder %s14, 2
      // Predicated region
      $region29: #{tpu_custom_call.1} parent=5 // pred_check
        %p178 = pneg %p177
      $region30: #{tpu_custom_call.1} parent=5 // pred_check_branch
        %180 = sbr.rel (%p178) target = $region32
      $region31: #{tpu_custom_call.1} parent=5 // pred_region
        // Predicated region
        $region33: #{tpu_custom_call.1} parent=31 // pred_check
          %p181 = pneg %p34
        $region34: #{tpu_custom_call.1} parent=31 // pred_check_branch
          %183 = sbr.rel (%p181) target = $region36
        $region35: #{tpu_custom_call.1} parent=31 // pred_region
          %p184 = scmp.lt.s32.totalorder %s14, 1
          %s185 = scalar_select %p184, %s14, 1
          %s186 = smul.addr %s185, 2
          %s187 = smul.addr %s186, 8
          %s188 = scalar_lea.vmem %s0, %s187
        $region36: #{tpu_custom_call.1} parent=31 // pred_fallthru
          _
      $region32: #{tpu_custom_call.1} parent=5 // pred_fallthru
        _
      %p189 = scmp.le.s32.totalorder 1, %s14
      %p190 = scmp.lt.s32.totalorder %s14, 3
      %p191 = pnand %p189, %p190
      %p192 = pneg %p191
      // Predicated region
      $region37: #{tpu_custom_call.1} parent=5 // pred_check
        _
      $region38: #{tpu_custom_call.1} parent=5 // pred_check_branch
        %194 = sbr.rel (%p191) target = $region40
      $region39: #{tpu_custom_call.1} parent=5 // pred_region
        %s195 = ssub.s32 %s14, 1
        %p196 = scmp.lt.s32.totalorder %s19, 1
        %s197 = scalar_select %p196, %s19, 1
        %s198 = smul.addr %s197, 2
        %s199 = smul.addr %s198, 8
        %s200 = scalar_lea.vmem %s0, %s199
        %p201 = pneg %p40
        %p202 = pneg %p37
        %p203 = pneg %p61
        %p204 = pneg %p58
        %p205 = pneg %p82
        %p206 = pneg %p79
        %p207 = pneg %p103
        %p208 = pneg %p100
        %p209 = pneg %p124
        %p210 = pneg %p121
        %p211 = pneg %p150
        %p212 = pneg %p147
        %s213 = sand.u32 %s137, 1
        %s214 = scalar_lea.sflag [#allocation3], %s213
        %s215 = sand.u32 %s137, 1
        %s216 = smul.addr %s215, 16
        %s217 = scalar_lea.vmem [#allocation2], %s216
        %p218 = scmp.lt.s32.totalorder %s19, 1
        %s219 = scalar_select %p218, %s19, 1
        %s220 = smul.addr %s219, 2
        %s221 = smul.addr %s220, 8
        %s222 = scalar_lea.vmem %s0, %s221
        %v223 = vld [vmem:[%s222] sm:$0xff]
        %v224 = vld [vmem:[%s222 + $0x8] sm:$0xff]
        %vm225 = vcmask 261120
        %v226 = vsel %vm225, %v223, 0.0
        %227 = vadd.xlane.f32.xlu0 %v226
        %v228 = vpop.xlane.xlu0 %227
        %v229 = vsel %vm225, %v224, 0.0
        %230 = vadd.xlane.f32.xlu0 %v229
        %v231 = vpop.xlane.xlu0 %230
        %v232 = vrcp.pop 32.0
        %v233 = vmul.f32 %v228, %v232
        %v234 = vmul.f32 %v231, %v232
        %v235 = vsub.f32 %v223, %v233
        %v236 = vsub.f32 %v224, %v234
        %v237 = vmul.f32 %v235, %v235
        %v238 = vmul.f32 %v236, %v236
        %v239 = vsel %vm225, %v237, 0.0
        %240 = vadd.xlane.f32.xlu0 %v239
        %v241 = vpop.xlane.xlu0 %240
        %v242 = vsel %vm225, %v238, 0.0
        %243 = vadd.xlane.f32.xlu0 %v242
        %v244 = vpop.xlane.xlu0 %243
        %v245 = vmul.f32 %v241, %v232
        %v246 = vmul.f32 %v244, %v232
        %v247 = vadd.f32 %v245, 1e-05
        %v248 = vadd.f32 %v246, 1e-05
        %v249 = vrsqrt.pop %v247
        %v250 = vrsqrt.pop %v248
        %v251 = vmul.f32 %v235, %v249
        %v252 = vmul.f32 %v236, %v250
        %v253 = vld [vmem:[%s1] sm:$0x1]
        %v255 = vlaneseq
        %v256 = vshrl.u32 %v255, 7
        %v257 = vsub.s32 0, %v256
        %v258 = vrot.slane %v253, %v257
        %v260 = vmul.f32 %v251, %v258
        %v261 = vmul.f32 %v252, %v258
        %v262 = vld [vmem:[%s2] sm:$0x1]
        %v264 = vlaneseq
        %v265 = vshrl.u32 %v264, 7
        %v266 = vsub.s32 0, %v265
        %v267 = vrot.slane %v262, %v266
        %v269 = vadd.f32 %v260, %v267
        %v270 = vadd.f32 %v261, %v267
        %v271 = vld [vmem:[%s3] sm:$0xff]
        %v272 = vld [vmem:[%s3 + $0x8] sm:$0xff]
        %v273 = vld [vmem:[%s3 + $0x10] sm:$0xff]
        %v274 = vld [vmem:[%s3 + $0x18] sm:$0xff]
        %v276 = vsel %vm225, %v269, 0
        %v279 = vsel %vm225, %v270, 0
        %281 = vmatprep.subr.mxu0 0.0
        %282 = vmatpush1.msra.mxu0 %v271
        %283 = vmatprep.subr.mxu0 0.0
        %284 = vmatpush1.msra.mxu0 %v272
        %285 = vmatprep.subr.mxu0 0.0
        %286 = vmatpush1.msra.mxu0 %v273
        %287 = vmatprep.subr.mxu0 0.0
        %288 = vmatpush1.msra.mxu0 %v274
        %289 = vmatprep.subr.mxu0 0.0
        %290 = vmatpush1.msra.mxu0 0.0
        %291 = vmatprep.subr.mxu0 0.0
        %292 = vmatpush1.msra.mxu0 0.0
        %293 = vmatprep.subr.mxu0 0.0
        %294 = vmatpush1.msra.mxu0 0.0
        %295 = vmatprep.subr.mxu0 0.0
        %296 = vmatpush1.msra.mxu0 0.0
        %297 = vmatprep.subr.mxu0 0.0
        %298 = vmatpush1.msra.mxu0 0.0
        %299 = vmatprep.subr.mxu0 0.0
        %300 = vmatpush1.msra.mxu0 0.0
        %301 = vmatprep.subr.mxu0 0.0
        %302 = vmatpush1.msra.mxu0 0.0
        %303 = vmatprep.subr.mxu0 0.0
        %304 = vmatpush1.msra.mxu0 0.0
        %305 = vmatprep.subr.mxu0 0.0
        %306 = vmatpush1.msra.mxu0 0.0
        %307 = vmatprep.subr.mxu0 0.0
        %308 = vmatpush1.msra.mxu0 0.0
        %309 = vmatprep.subr.mxu0 0.0
        %310 = vmatpush1.msra.mxu0 0.0
        %311 = vmatprep.subr.mxu0 0.0
        %312 = vmatpush1.msra.mxu0 0.0
        %313 = vmatprep.subr.mxu0 0.0
        %314 = vmatpush1.msra.mxu0 0.0
        %315 = vmatprep.subr.mxu0 0.0
        %316 = vmatpush1.msra.mxu0 0.0
        %317 = vmatprep.subr.mxu0 0.0
        %318 = vmatpush1.msra.mxu0 0.0
        %319 = vmatprep.subr.mxu0 0.0
        %320 = vmatpush1.msra.mxu0 0.0
        %321 = vmatprep.subr.mxu0 0.0
        %322 = vmatpush1.msra.mxu0 0.0
        %323 = vmatprep.subr.mxu0 0.0
        %324 = vmatpush1.msra.mxu0 0.0
        %325 = vmatprep.subr.mxu0 0.0
        %326 = vmatpush1.msra.mxu0 0.0
        %327 = vmatprep.subr.mxu0 0.0
        %328 = vmatpush1.msra.mxu0 0.0
        %329 = vmatprep.subr.mxu0 0.0
        %330 = vmatpush1.msra.mxu0 0.0
        %331 = vmatprep.subr.mxu0 0.0
        %332 = vmatpush1.msra.mxu0 0.0
        %333 = vmatprep.subr.mxu0 0.0
        %334 = vmatpush1.msra.mxu0 0.0
        %335 = vmatprep.subr.mxu0 0.0
        %336 = vmatpush1.msra.mxu0 0.0
        %337 = vmatprep.subr.mxu0 0.0
        %338 = vmatpush1.msra.mxu0 0.0
        %339 = vmatprep.subr.mxu0 0.0
        %340 = vmatpush1.msra.mxu0 0.0
        %341 = vmatprep.subr.mxu0 0.0
        %342 = vmatpush1.msra.mxu0 0.0
        %343 = vmatprep.subr.mxu0 0.0
        %344 = vmatpush1.msra.mxu0 0.0
        %345 = vmatprep.mubr.f32.mxu0 0.0
        %346 = vmatmul.mubr.f32.gmra.mrb[0].mxu0 %v276
        %v347 = vpop.f32.mrb[0].mxu0
        %v348 = vadd.f32 0.0, %v347
        %v349 = vpop.f32.mrb[0].mxu0
        %350 = vmatprep.mubr.f32.mxu0 0.0
        %351 = vmatmul.mubr.f32.gmra.mrb[0].mxu0 %v279
        %v352 = vpop.f32.mrb[0].mxu0
        %v353 = vadd.f32 0.0, %v352
        %v354 = vpop.f32.mrb[0].mxu0
        %355 = vdwg.mxu0
        %v356 = vlaneseq
        %v357 = vshrl.u32 %v356, 7
        %v358 = vadd.s32 %v357, 8
        %v359 = vld [vmem:[%s4 + $0x1] sm:$0x1]
        %362 = vrot.lane.b32.xlu0 %v348, 96
        %v363 = vpop.permute.xlu0 %362
        %364 = vrot.lane.b32.xlu0 %v353, 96
        %v365 = vpop.permute.xlu0 %364
        %v368 = vrot.slane %v363, 1
        %v369 = vrot.slane %v365, 1
        %vm370 = vcmp.lt.s32.totalorder %v357, 7
        %v371 = vsel %vm370, %v368, %v369
        %v372 = vsel %vm370, %v369, %v368
        %vm373 = vcmp.ge.s32.totalorder %v357, 15
        %vm374 = vcmp.ge.s32.totalorder %v358, 15
        %vm375 = vcmp.lt.s32.totalorder %v357, 31
        %vm376 = vcmp.lt.s32.totalorder %v358, 31
        %vm377 = vmand %vm373, %vm375
        %vm378 = vmand %vm374, %vm376
        %v379 = vsel %vm377, 1, 0
        %v380 = vsel %vm378, 1, 0
        %v381 = vcvt.s32.f32 %v379
        %v382 = vcvt.s32.f32 %v380
        %v383 = vmul.f32 %v371, %v381
        %v384 = vmul.f32 %v372, %v382
        %v385 = vlaneseq
        %v386 = vshrl.u32 %v385, 7
        %v387 = vsub.s32 0, %v386
        %v388 = vrot.slane %v359, %v387
        %v389 = vmul.f32 %v383, %v388
        %v390 = vmul.f32 %v384, %v388
        %v391 = vadd.f32 %v389, 0.0
        %v392 = vadd.f32 %v390, 0.0
        %v393 = vld [vmem:[%s4 + $0x2] sm:$0x1]
        %v394 = vrot.slane %v363, 2
        %v395 = vrot.slane %v365, 2
        %vm396 = vcmp.lt.s32.totalorder %v357, 6
        %v397 = vsel %vm396, %v394, %v395
        %v398 = vsel %vm396, %v395, %v394
        %vm399 = vcmp.ge.s32.totalorder %v357, 14
        %vm400 = vcmp.ge.s32.totalorder %v358, 14
        %vm401 = vcmp.lt.s32.totalorder %v357, 30
        %vm402 = vcmp.lt.s32.totalorder %v358, 30
        %vm403 = vmand %vm399, %vm401
        %vm404 = vmand %vm400, %vm402
        %v405 = vsel %vm403, 1, 0
        %v406 = vsel %vm404, 1, 0
        %v407 = vcvt.s32.f32 %v405
        %v408 = vcvt.s32.f32 %v406
        %v409 = vmul.f32 %v397, %v407
        %v410 = vmul.f32 %v398, %v408
        %v411 = vlaneseq
        %v412 = vshrl.u32 %v411, 7
        %v413 = vsub.s32 0, %v412
        %v414 = vrot.slane %v393, %v413
        %v415 = vmul.f32 %v409, %v414
        %v416 = vmul.f32 %v410, %v414
        %v417 = vadd.f32 %v391, %v415
        %v418 = vadd.f32 %v392, %v416
        %v419 = vld [vmem:[%s4 + $0x3] sm:$0x1]
        %v420 = vrot.slane %v363, 3
        %v421 = vrot.slane %v365, 3
        %vm422 = vcmp.lt.s32.totalorder %v357, 5
        %v423 = vsel %vm422, %v420, %v421
        %v424 = vsel %vm422, %v421, %v420
        %vm425 = vcmp.ge.s32.totalorder %v357, 13
        %vm426 = vcmp.ge.s32.totalorder %v358, 13
        %vm427 = vcmp.lt.s32.totalorder %v357, 29
        %vm428 = vcmp.lt.s32.totalorder %v358, 29
        %vm429 = vmand %vm425, %vm427
        %vm430 = vmand %vm426, %vm428
        %v431 = vsel %vm429, 1, 0
        %v432 = vsel %vm430, 1, 0
        %v433 = vcvt.s32.f32 %v431
        %v434 = vcvt.s32.f32 %v432
        %v435 = vmul.f32 %v423, %v433
        %v436 = vmul.f32 %v424, %v434
        %v437 = vlaneseq
        %v438 = vshrl.u32 %v437, 7
        %v439 = vsub.s32 0, %v438
        %v440 = vrot.slane %v419, %v439
        %v441 = vmul.f32 %v435, %v440
        %v442 = vmul.f32 %v436, %v440
        %v443 = vadd.f32 %v417, %v441
        %v444 = vadd.f32 %v418, %v442
        %v445 = vld [vmem:[%s4 + $0x4] sm:$0x1]
        %v446 = vrot.slane %v363, 4
        %v447 = vrot.slane %v365, 4
        %vm448 = vcmp.lt.s32.totalorder %v357, 4
        %v449 = vsel %vm448, %v446, %v447
        %v450 = vsel %vm448, %v447, %v446
        %vm451 = vcmp.ge.s32.totalorder %v357, 12
        %vm452 = vcmp.ge.s32.totalorder %v358, 12
        %vm453 = vcmp.lt.s32.totalorder %v357, 28
        %vm454 = vcmp.lt.s32.totalorder %v358, 28
        %vm455 = vmand %vm451, %vm453
        %vm456 = vmand %vm452, %vm454
        %v457 = vsel %vm455, 1, 0
        %v458 = vsel %vm456, 1, 0
        %v459 = vcvt.s32.f32 %v457
        %v460 = vcvt.s32.f32 %v458
        %v461 = vmul.f32 %v449, %v459
        %v462 = vmul.f32 %v450, %v460
        %v463 = vlaneseq
        %v464 = vshrl.u32 %v463, 7
        %v465 = vsub.s32 0, %v464
        %v466 = vrot.slane %v445, %v465
        %v467 = vmul.f32 %v461, %v466
        %v468 = vmul.f32 %v462, %v466
        %v469 = vadd.f32 %v443, %v467
        %v470 = vadd.f32 %v444, %v468
        %v471 = vld [vmem:[%s4 + $0x5] sm:$0x1]
        %v472 = vrot.slane %v363, 5
        %v473 = vrot.slane %v365, 5
        %vm474 = vcmp.lt.s32.totalorder %v357, 3
        %v475 = vsel %vm474, %v472, %v473
        %v476 = vsel %vm474, %v473, %v472
        %vm477 = vcmp.ge.s32.totalorder %v357, 11
        %vm478 = vcmp.ge.s32.totalorder %v358, 11
        %vm479 = vcmp.lt.s32.totalorder %v357, 27
        %vm480 = vcmp.lt.s32.totalorder %v358, 27
        %vm481 = vmand %vm477, %vm479
        %vm482 = vmand %vm478, %vm480
        %v483 = vsel %vm481, 1, 0
        %v484 = vsel %vm482, 1, 0
        %v485 = vcvt.s32.f32 %v483
        %v486 = vcvt.s32.f32 %v484
        %v487 = vmul.f32 %v475, %v485
        %v488 = vmul.f32 %v476, %v486
        %v489 = vlaneseq
        %v490 = vshrl.u32 %v489, 7
        %v491 = vsub.s32 0, %v490
        %v492 = vrot.slane %v471, %v491
        %v493 = vmul.f32 %v487, %v492
        %v494 = vmul.f32 %v488, %v492
        %v495 = vadd.f32 %v469, %v493
        %v496 = vadd.f32 %v470, %v494
        %v497 = vld [vmem:[%s4 + $0x6] sm:$0x1]
        %v498 = vrot.slane %v363, 6
        %v499 = vrot.slane %v365, 6
        %vm500 = vcmp.lt.s32.totalorder %v357, 2
        %v501 = vsel %vm500, %v498, %v499
        %v502 = vsel %vm500, %v499, %v498
        %vm503 = vcmp.ge.s32.totalorder %v357, 10
        %vm504 = vcmp.ge.s32.totalorder %v358, 10
        %vm505 = vcmp.lt.s32.totalorder %v357, 26
        %vm506 = vcmp.lt.s32.totalorder %v358, 26
        %vm507 = vmand %vm503, %vm505
        %vm508 = vmand %vm504, %vm506
        %v509 = vsel %vm507, 1, 0
        %v510 = vsel %vm508, 1, 0
        %v511 = vcvt.s32.f32 %v509
        %v512 = vcvt.s32.f32 %v510
        %v513 = vmul.f32 %v501, %v511
        %v514 = vmul.f32 %v502, %v512
        %v515 = vlaneseq
        %v516 = vshrl.u32 %v515, 7
        %v517 = vsub.s32 0, %v516
        %v518 = vrot.slane %v497, %v517
        %v519 = vmul.f32 %v513, %v518
        %v520 = vmul.f32 %v514, %v518
        %v521 = vadd.f32 %v495, %v519
        %v522 = vadd.f32 %v496, %v520
        %v523 = vld [vmem:[%s4 + $0x7] sm:$0x1]
        %v524 = vrot.slane %v363, 7
        %v525 = vrot.slane %v365, 7
        %vm526 = vcmp.lt.s32.totalorder %v357, 1
        %v527 = vsel %vm526, %v524, %v525
        %v528 = vsel %vm526, %v525, %v524
        %vm529 = vcmp.ge.s32.totalorder %v357, 9
        %vm530 = vcmp.ge.s32.totalorder %v358, 9
        %vm531 = vcmp.lt.s32.totalorder %v357, 25
        %vm532 = vcmp.lt.s32.totalorder %v358, 25
        %vm533 = vmand %vm529, %vm531
        %vm534 = vmand %vm530, %vm532
        %v535 = vsel %vm533, 1, 0
        %v536 = vsel %vm534, 1, 0
        %v537 = vcvt.s32.f32 %v535
        %v538 = vcvt.s32.f32 %v536
        %v539 = vmul.f32 %v527, %v537
        %v540 = vmul.f32 %v528, %v538
        %v541 = vlaneseq
        %v542 = vshrl.u32 %v541, 7
        %v543 = vsub.s32 0, %v542
        %v544 = vrot.slane %v523, %v543
        %v545 = vmul.f32 %v539, %v544
        %v546 = vmul.f32 %v540, %v544
        %v547 = vadd.f32 %v521, %v545
        %v548 = vadd.f32 %v522, %v546
        %v549 = vld [vmem:[%s4 + $0x8] sm:$0x1]
        %vm550 = vcmp.ge.s32.totalorder %v357, 8
        %vm551 = vcmp.ge.s32.totalorder %v358, 8
        %vm552 = vcmp.lt.s32.totalorder %v357, 24
        %vm553 = vcmp.lt.s32.totalorder %v358, 24
        %vm554 = vmand %vm550, %vm552
        %vm555 = vmand %vm551, %vm553
        %v556 = vsel %vm554, 1, 0
        %v557 = vsel %vm555, 1, 0
        %v558 = vcvt.s32.f32 %v556
        %v559 = vcvt.s32.f32 %v557
        %v560 = vmul.f32 %v365, %v558
        %v561 = vmul.f32 %v363, %v559
        %v562 = vlaneseq
        %v563 = vshrl.u32 %v562, 7
        %v564 = vsub.s32 0, %v563
        %v565 = vrot.slane %v549, %v564
        %v566 = vmul.f32 %v560, %v565
        %v567 = vmul.f32 %v561, %v565
        %v568 = vadd.f32 %v547, %v566
        %v569 = vadd.f32 %v548, %v567
        %v570 = vld [vmem:[%s4 + $0x9] sm:$0x1]
        %vm571 = vcmp.ge.s32.totalorder %v357, 7
        %vm572 = vcmp.ge.s32.totalorder %v358, 7
        %vm573 = vcmp.lt.s32.totalorder %v357, 23
        %vm574 = vcmp.lt.s32.totalorder %v358, 23
        %vm575 = vmand %vm571, %vm573
        %vm576 = vmand %vm572, %vm574
        %v577 = vsel %vm575, 1, 0
        %v578 = vsel %vm576, 1, 0
        %v579 = vcvt.s32.f32 %v577
        %v580 = vcvt.s32.f32 %v578
        %v581 = vmul.f32 %v372, %v579
        %v582 = vmul.f32 %v371, %v580
        %v583 = vlaneseq
        %v584 = vshrl.u32 %v583, 7
        %v585 = vsub.s32 0, %v584
        %v586 = vrot.slane %v570, %v585
        %v587 = vmul.f32 %v581, %v586
        %v588 = vmul.f32 %v582, %v586
        %v589 = vadd.f32 %v568, %v587
        %v590 = vadd.f32 %v569, %v588
        %v591 = vld [vmem:[%s4 + $0xa] sm:$0x1]
        %vm592 = vcmp.ge.s32.totalorder %v357, 6
        %vm593 = vcmp.ge.s32.totalorder %v358, 6
        %vm594 = vcmp.lt.s32.totalorder %v357, 22
        %vm595 = vcmp.lt.s32.totalorder %v358, 22
        %vm596 = vmand %vm592, %vm594
        %vm597 = vmand %vm593, %vm595
        %v598 = vsel %vm596, 1, 0
        %v599 = vsel %vm597, 1, 0
        %v600 = vcvt.s32.f32 %v598
        %v601 = vcvt.s32.f32 %v599
        %v602 = vmul.f32 %v398, %v600
        %v603 = vmul.f32 %v397, %v601
        %v604 = vlaneseq
        %v605 = vshrl.u32 %v604, 7
        %v606 = vsub.s32 0, %v605
        %v607 = vrot.slane %v591, %v606
        %v608 = vmul.f32 %v602, %v607
        %v609 = vmul.f32 %v603, %v607
        %v610 = vadd.f32 %v589, %v608
        %v611 = vadd.f32 %v590, %v609
        %v612 = vld [vmem:[%s4 + $0xb] sm:$0x1]
        %vm613 = vcmp.ge.s32.totalorder %v357, 5
        %vm614 = vcmp.ge.s32.totalorder %v358, 5
        %vm615 = vcmp.lt.s32.totalorder %v357, 21
        %vm616 = vcmp.lt.s32.totalorder %v358, 21
        %vm617 = vmand %vm613, %vm615
        %vm618 = vmand %vm614, %vm616
        %v619 = vsel %vm617, 1, 0
        %v620 = vsel %vm618, 1, 0
        %v621 = vcvt.s32.f32 %v619
        %v622 = vcvt.s32.f32 %v620
        %v623 = vmul.f32 %v424, %v621
        %v624 = vmul.f32 %v423, %v622
        %v625 = vlaneseq
        %v626 = vshrl.u32 %v625, 7
        %v627 = vsub.s32 0, %v626
        %v628 = vrot.slane %v612, %v627
        %v629 = vmul.f32 %v623, %v628
        %v630 = vmul.f32 %v624, %v628
        %v631 = vadd.f32 %v610, %v629
        %v632 = vadd.f32 %v611, %v630
        %v633 = vld [vmem:[%s4 + $0xc] sm:$0x1]
        %vm634 = vcmp.ge.s32.totalorder %v357, 4
        %vm635 = vcmp.ge.s32.totalorder %v358, 4
        %vm636 = vcmp.lt.s32.totalorder %v357, 20
        %vm637 = vcmp.lt.s32.totalorder %v358, 20
        %vm638 = vmand %vm634, %vm636
        %vm639 = vmand %vm635, %vm637
        %v640 = vsel %vm638, 1, 0
        %v641 = vsel %vm639, 1, 0
        %v642 = vcvt.s32.f32 %v640
        %v643 = vcvt.s32.f32 %v641
        %v644 = vmul.f32 %v450, %v642
        %v645 = vmul.f32 %v449, %v643
        %v646 = vlaneseq
        %v647 = vshrl.u32 %v646, 7
        %v648 = vsub.s32 0, %v647
        %v649 = vrot.slane %v633, %v648
        %v650 = vmul.f32 %v644, %v649
        %v651 = vmul.f32 %v645, %v649
        %v652 = vadd.f32 %v631, %v650
        %v653 = vadd.f32 %v632, %v651
        %v654 = vld [vmem:[%s4 + $0xd] sm:$0x1]
        %vm655 = vcmp.ge.s32.totalorder %v357, 3
        %vm656 = vcmp.ge.s32.totalorder %v358, 3
        %vm657 = vcmp.lt.s32.totalorder %v357, 19
        %vm658 = vcmp.lt.s32.totalorder %v358, 19
        %vm659 = vmand %vm655, %vm657
        %vm660 = vmand %vm656, %vm658
        %v661 = vsel %vm659, 1, 0
        %v662 = vsel %vm660, 1, 0
        %v663 = vcvt.s32.f32 %v661
        %v664 = vcvt.s32.f32 %v662
        %v665 = vmul.f32 %v476, %v663
        %v666 = vmul.f32 %v475, %v664
        %v667 = vlaneseq
        %v668 = vshrl.u32 %v667, 7
        %v669 = vsub.s32 0, %v668
        %v670 = vrot.slane %v654, %v669
        %v671 = vmul.f32 %v665, %v670
        %v672 = vmul.f32 %v666, %v670
        %v673 = vadd.f32 %v652, %v671
        %v674 = vadd.f32 %v653, %v672
        %v675 = vld [vmem:[%s4 + $0xe] sm:$0x1]
        %vm676 = vcmp.ge.s32.totalorder %v357, 2
        %vm677 = vcmp.ge.s32.totalorder %v358, 2
        %vm678 = vcmp.lt.s32.totalorder %v357, 18
        %vm679 = vcmp.lt.s32.totalorder %v358, 18
        %vm680 = vmand %vm676, %vm678
        %vm681 = vmand %vm677, %vm679
        %v682 = vsel %vm680, 1, 0
        %v683 = vsel %vm681, 1, 0
        %v684 = vcvt.s32.f32 %v682
        %v685 = vcvt.s32.f32 %v683
        %v686 = vmul.f32 %v502, %v684
        %v687 = vmul.f32 %v501, %v685
        %v688 = vlaneseq
        %v689 = vshrl.u32 %v688, 7
        %v690 = vsub.s32 0, %v689
        %v691 = vrot.slane %v675, %v690
        %v692 = vmul.f32 %v686, %v691
        %v693 = vmul.f32 %v687, %v691
        %v694 = vadd.f32 %v673, %v692
        %v695 = vadd.f32 %v674, %v693
        %v696 = vld [vmem:[%s4 + $0xf] sm:$0x1]
        %vm697 = vcmp.ge.s32.totalorder %v357, 1
        %vm698 = vcmp.ge.s32.totalorder %v358, 1
        %vm699 = vcmp.lt.s32.totalorder %v357, 17
        %vm700 = vcmp.lt.s32.totalorder %v358, 17
        %vm701 = vmand %vm697, %vm699
        %vm702 = vmand %vm698, %vm700
        %v703 = vsel %vm701, 1, 0
        %v704 = vsel %vm702, 1, 0
        %v705 = vcvt.s32.f32 %v703
        %v706 = vcvt.s32.f32 %v704
        %v707 = vmul.f32 %v528, %v705
        %v708 = vmul.f32 %v527, %v706
        %v709 = vlaneseq
        %v710 = vshrl.u32 %v709, 7
        %v711 = vsub.s32 0, %v710
        %v712 = vrot.slane %v696, %v711
        %v713 = vmul.f32 %v707, %v712
        %v714 = vmul.f32 %v708, %v712
        %v715 = vadd.f32 %v694, %v713
        %v716 = vadd.f32 %v695, %v714
        %v717 = vld [vmem:[%s4 + $0x10] sm:$0x1]
        %v718 = vlaneseq
        %v719 = vshrl.u32 %v718, 7
        %v720 = vsub.s32 0, %v719
        %v721 = vrot.slane %v717, %v720
        %723 = vrot.lane.b32.xlu0 %v721, 32
        %v724 = vpop.permute.xlu0 %723
        %v726 = vmul.f32 %v348, %v724
        %v727 = vmul.f32 %v353, %v724
        %730 = vrot.lane.b32.xlu0 %v726, 96
        %v731 = vpop.permute.xlu0 %730
        %732 = vrot.lane.b32.xlu0 %v727, 96
        %v733 = vpop.permute.xlu0 %732
        %v736 = vadd.f32 %v715, %v731
        %v737 = vadd.f32 %v716, %v733
        %v738 = vld [vmem:[%s4 + $0x11] sm:$0x1]
        %vm739 = vcmp.ge.s32.totalorder %v357, 4294967295
        %vm740 = vcmp.ge.s32.totalorder %v358, 4294967295
        %vm741 = vcmp.lt.s32.totalorder %v357, 15
        %vm742 = vcmp.lt.s32.totalorder %v358, 15
        %vm743 = vmand %vm739, %vm741
        %vm744 = vmand %vm740, %vm742
        %v745 = vsel %vm743, 1, 0
        %v746 = vsel %vm744, 1, 0
        %v747 = vcvt.s32.f32 %v745
        %v748 = vcvt.s32.f32 %v746
        %v749 = vmul.f32 %v371, %v747
        %v750 = vmul.f32 %v372, %v748
        %v751 = vlaneseq
        %v752 = vshrl.u32 %v751, 7
        %v753 = vsub.s32 0, %v752
        %v754 = vrot.slane %v738, %v753
        %v755 = vmul.f32 %v749, %v754
        %v756 = vmul.f32 %v750, %v754
        %v757 = vadd.f32 %v736, %v755
        %v758 = vadd.f32 %v737, %v756
        %v759 = vld [vmem:[%s4 + $0x12] sm:$0x1]
        %vm760 = vcmp.ge.s32.totalorder %v357, 4294967294
        %vm761 = vcmp.ge.s32.totalorder %v358, 4294967294
        %vm762 = vcmp.lt.s32.totalorder %v357, 14
        %vm763 = vcmp.lt.s32.totalorder %v358, 14
        %vm764 = vmand %vm760, %vm762
        %vm765 = vmand %vm761, %vm763
        %v766 = vsel %vm764, 1, 0
        %v767 = vsel %vm765, 1, 0
        %v768 = vcvt.s32.f32 %v766
        %v769 = vcvt.s32.f32 %v767
        %v770 = vmul.f32 %v397, %v768
        %v771 = vmul.f32 %v398, %v769
        %v772 = vlaneseq
        %v773 = vshrl.u32 %v772, 7
        %v774 = vsub.s32 0, %v773
        %v775 = vrot.slane %v759, %v774
        %v776 = vmul.f32 %v770, %v775
        %v777 = vmul.f32 %v771, %v775
        %v778 = vadd.f32 %v757, %v776
        %v779 = vadd.f32 %v758, %v777
        %v780 = vld [vmem:[%s4 + $0x13] sm:$0x1]
        %vm781 = vcmp.ge.s32.totalorder %v357, 4294967293
        %vm782 = vcmp.ge.s32.totalorder %v358, 4294967293
        %vm783 = vcmp.lt.s32.totalorder %v357, 13
        %vm784 = vcmp.lt.s32.totalorder %v358, 13
        %vm785 = vmand %vm781, %vm783
        %vm786 = vmand %vm782, %vm784
        %v787 = vsel %vm785, 1, 0
        %v788 = vsel %vm786, 1, 0
        %v789 = vcvt.s32.f32 %v787
        %v790 = vcvt.s32.f32 %v788
        %v791 = vmul.f32 %v423, %v789
        %v792 = vmul.f32 %v424, %v790
        %v793 = vlaneseq
        %v794 = vshrl.u32 %v793, 7
        %v795 = vsub.s32 0, %v794
        %v796 = vrot.slane %v780, %v795
        %v797 = vmul.f32 %v791, %v796
        %v798 = vmul.f32 %v792, %v796
        %v799 = vadd.f32 %v778, %v797
        %v800 = vadd.f32 %v779, %v798
        %v801 = vld [vmem:[%s4 + $0x14] sm:$0x1]
        %vm802 = vcmp.ge.s32.totalorder %v357, 4294967292
        %vm803 = vcmp.ge.s32.totalorder %v358, 4294967292
        %vm804 = vcmp.lt.s32.totalorder %v357, 12
        %vm805 = vcmp.lt.s32.totalorder %v358, 12
        %vm806 = vmand %vm802, %vm804
        %vm807 = vmand %vm803, %vm805
        %v808 = vsel %vm806, 1, 0
        %v809 = vsel %vm807, 1, 0
        %v810 = vcvt.s32.f32 %v808
        %v811 = vcvt.s32.f32 %v809
        %v812 = vmul.f32 %v449, %v810
        %v813 = vmul.f32 %v450, %v811
        %v814 = vlaneseq
        %v815 = vshrl.u32 %v814, 7
        %v816 = vsub.s32 0, %v815
        %v817 = vrot.slane %v801, %v816
        %v818 = vmul.f32 %v812, %v817
        %v819 = vmul.f32 %v813, %v817
        %v820 = vadd.f32 %v799, %v818
        %v821 = vadd.f32 %v800, %v819
        %v822 = vld [vmem:[%s4 + $0x15] sm:$0x1]
        %vm823 = vcmp.ge.s32.totalorder %v357, 4294967291
        %vm824 = vcmp.ge.s32.totalorder %v358, 4294967291
        %vm825 = vcmp.lt.s32.totalorder %v357, 11
        %vm826 = vcmp.lt.s32.totalorder %v358, 11
        %vm827 = vmand %vm823, %vm825
        %vm828 = vmand %vm824, %vm826
        %v829 = vsel %vm827, 1, 0
        %v830 = vsel %vm828, 1, 0
        %v831 = vcvt.s32.f32 %v829
        %v832 = vcvt.s32.f32 %v830
        %v833 = vmul.f32 %v475, %v831
        %v834 = vmul.f32 %v476, %v832
        %v835 = vlaneseq
        %v836 = vshrl.u32 %v835, 7
        %v837 = vsub.s32 0, %v836
        %v838 = vrot.slane %v822, %v837
        %v839 = vmul.f32 %v833, %v838
        %v840 = vmul.f32 %v834, %v838
        %v841 = vadd.f32 %v820, %v839
        %v842 = vadd.f32 %v821, %v840
        %v843 = vld [vmem:[%s4 + $0x16] sm:$0x1]
        %vm844 = vcmp.ge.s32.totalorder %v357, 4294967290
        %vm845 = vcmp.ge.s32.totalorder %v358, 4294967290
        %vm846 = vcmp.lt.s32.totalorder %v357, 10
        %vm847 = vcmp.lt.s32.totalorder %v358, 10
        %vm848 = vmand %vm844, %vm846
        %vm849 = vmand %vm845, %vm847
        %v850 = vsel %vm848, 1, 0
        %v851 = vsel %vm849, 1, 0
        %v852 = vcvt.s32.f32 %v850
        %v853 = vcvt.s32.f32 %v851
        %v854 = vmul.f32 %v501, %v852
        %v855 = vmul.f32 %v502, %v853
        %v856 = vlaneseq
        %v857 = vshrl.u32 %v856, 7
        %v858 = vsub.s32 0, %v857
        %v859 = vrot.slane %v843, %v858
        %v860 = vmul.f32 %v854, %v859
        %v861 = vmul.f32 %v855, %v859
        %v862 = vadd.f32 %v841, %v860
        %v863 = vadd.f32 %v842, %v861
        %v864 = vld [vmem:[%s4 + $0x17] sm:$0x1]
        %vm865 = vcmp.ge.s32.totalorder %v357, 4294967289
        %vm866 = vcmp.ge.s32.totalorder %v358, 4294967289
        %vm867 = vcmp.lt.s32.totalorder %v357, 9
        %vm868 = vcmp.lt.s32.totalorder %v358, 9
        %vm869 = vmand %vm865, %vm867
        %vm870 = vmand %vm866, %vm868
        %v871 = vsel %vm869, 1, 0
        %v872 = vsel %vm870, 1, 0
        %v873 = vcvt.s32.f32 %v871
        %v874 = vcvt.s32.f32 %v872
        %v875 = vmul.f32 %v527, %v873
        %v876 = vmul.f32 %v528, %v874
        %v877 = vlaneseq
        %v878 = vshrl.u32 %v877, 7
        %v879 = vsub.s32 0, %v878
        %v880 = vrot.slane %v864, %v879
        %v881 = vmul.f32 %v875, %v880
        %v882 = vmul.f32 %v876, %v880
        %v883 = vadd.f32 %v862, %v881
        %v884 = vadd.f32 %v863, %v882
        %v885 = vld [vmem:[%s4 + $0x18] sm:$0x1]
        %vm886 = vcmp.ge.s32.totalorder %v357, 4294967288
        %vm887 = vcmp.ge.s32.totalorder %v358, 4294967288
        %vm888 = vcmp.lt.s32.totalorder %v357, 8
        %vm889 = vcmp.lt.s32.totalorder %v358, 8
        %vm890 = vmand %vm886, %vm888
        %vm891 = vmand %vm887, %vm889
        %v892 = vsel %vm890, 1, 0
        %v893 = vsel %vm891, 1, 0
        %v894 = vcvt.s32.f32 %v892
        %v895 = vcvt.s32.f32 %v893
        %v896 = vmul.f32 %v365, %v894
        %v897 = vmul.f32 %v363, %v895
        %v898 = vlaneseq
        %v899 = vshrl.u32 %v898, 7
        %v900 = vsub.s32 0, %v899
        %v901 = vrot.slane %v885, %v900
        %v902 = vmul.f32 %v896, %v901
        %v903 = vmul.f32 %v897, %v901
        %v904 = vadd.f32 %v883, %v902
        %v905 = vadd.f32 %v884, %v903
        %v906 = vld [vmem:[%s4 + $0x19] sm:$0x1]
        %vm907 = vcmp.ge.s32.totalorder %v357, 4294967287
        %vm908 = vcmp.ge.s32.totalorder %v358, 4294967287
        %vm909 = vcmp.lt.s32.totalorder %v358, 7
        %vm910 = vmand %vm907, %vm370
        %vm911 = vmand %vm908, %vm909
        %v912 = vsel %vm910, 1, 0
        %v913 = vsel %vm911, 1, 0
        %v914 = vcvt.s32.f32 %v912
        %v915 = vcvt.s32.f32 %v913
        %v916 = vmul.f32 %v372, %v914
        %v917 = vmul.f32 %v371, %v915
        %v918 = vlaneseq
        %v919 = vshrl.u32 %v918, 7
        %v920 = vsub.s32 0, %v919
        %v921 = vrot.slane %v906, %v920
        %v922 = vmul.f32 %v916, %v921
        %v923 = vmul.f32 %v917, %v921
        %v924 = vadd.f32 %v904, %v922
        %v925 = vadd.f32 %v905, %v923
        %v926 = vld [vmem:[%s4 + $0x1a] sm:$0x1]
        %vm927 = vcmp.ge.s32.totalorder %v357, 4294967286
        %vm928 = vcmp.ge.s32.totalorder %v358, 4294967286
        %vm929 = vcmp.lt.s32.totalorder %v358, 6
        %vm930 = vmand %vm927, %vm396
        %vm931 = vmand %vm928, %vm929
        %v932 = vsel %vm930, 1, 0
        %v933 = vsel %vm931, 1, 0
        %v934 = vcvt.s32.f32 %v932
        %v935 = vcvt.s32.f32 %v933
        %v936 = vmul.f32 %v398, %v934
        %v937 = vmul.f32 %v397, %v935
        %v938 = vlaneseq
        %v939 = vshrl.u32 %v938, 7
        %v940 = vsub.s32 0, %v939
        %v941 = vrot.slane %v926, %v940
        %v942 = vmul.f32 %v936, %v941
        %v943 = vmul.f32 %v937, %v941
        %v944 = vadd.f32 %v924, %v942
        %v945 = vadd.f32 %v925, %v943
        %v946 = vld [vmem:[%s4 + $0x1b] sm:$0x1]
        %vm947 = vcmp.ge.s32.totalorder %v357, 4294967285
        %vm948 = vcmp.ge.s32.totalorder %v358, 4294967285
        %vm949 = vcmp.lt.s32.totalorder %v358, 5
        %vm950 = vmand %vm947, %vm422
        %vm951 = vmand %vm948, %vm949
        %v952 = vsel %vm950, 1, 0
        %v953 = vsel %vm951, 1, 0
        %v954 = vcvt.s32.f32 %v952
        %v955 = vcvt.s32.f32 %v953
        %v956 = vmul.f32 %v424, %v954
        %v957 = vmul.f32 %v423, %v955
        %v958 = vlaneseq
        %v959 = vshrl.u32 %v958, 7
        %v960 = vsub.s32 0, %v959
        %v961 = vrot.slane %v946, %v960
        %v962 = vmul.f32 %v956, %v961
        %v963 = vmul.f32 %v957, %v961
        %v964 = vadd.f32 %v944, %v962
        %v965 = vadd.f32 %v945, %v963
        %v966 = vld [vmem:[%s4 + $0x1c] sm:$0x1]
        %vm967 = vcmp.ge.s32.totalorder %v357, 4294967284
        %vm968 = vcmp.ge.s32.totalorder %v358, 4294967284
        %vm969 = vcmp.lt.s32.totalorder %v358, 4
        %vm970 = vmand %vm967, %vm448
        %vm971 = vmand %vm968, %vm969
        %v972 = vsel %vm970, 1, 0
        %v973 = vsel %vm971, 1, 0
        %v974 = vcvt.s32.f32 %v972
        %v975 = vcvt.s32.f32 %v973
        %v976 = vmul.f32 %v450, %v974
        %v977 = vmul.f32 %v449, %v975
        %v978 = vlaneseq
        %v979 = vshrl.u32 %v978, 7
        %v980 = vsub.s32 0, %v979
        %v981 = vrot.slane %v966, %v980
        %v982 = vmul.f32 %v976, %v981
        %v983 = vmul.f32 %v977, %v981
        %v984 = vadd.f32 %v964, %v982
        %v985 = vadd.f32 %v965, %v983
        %v986 = vld [vmem:[%s4 + $0x1d] sm:$0x1]
        %vm987 = vcmp.ge.s32.totalorder %v357, 4294967283
        %vm988 = vcmp.ge.s32.totalorder %v358, 4294967283
        %vm989 = vcmp.lt.s32.totalorder %v358, 3
        %vm990 = vmand %vm987, %vm474
        %vm991 = vmand %vm988, %vm989
        %v992 = vsel %vm990, 1, 0
        %v993 = vsel %vm991, 1, 0
        %v994 = vcvt.s32.f32 %v992
        %v995 = vcvt.s32.f32 %v993
        %v996 = vmul.f32 %v476, %v994
        %v997 = vmul.f32 %v475, %v995
        %v998 = vlaneseq
        %v999 = vshrl.u32 %v998, 7
        %v1000 = vsub.s32 0, %v999
        %v1001 = vrot.slane %v986, %v1000
        %v1002 = vmul.f32 %v996, %v1001
        %v1003 = vmul.f32 %v997, %v1001
        %v1004 = vadd.f32 %v984, %v1002
        %v1005 = vadd.f32 %v985, %v1003
        %v1006 = vld [vmem:[%s4 + $0x1e] sm:$0x1]
        %vm1007 = vcmp.ge.s32.totalorder %v357, 4294967282
        %vm1008 = vcmp.ge.s32.totalorder %v358, 4294967282
        %vm1009 = vcmp.lt.s32.totalorder %v358, 2
        %vm1010 = vmand %vm1007, %vm500
        %vm1011 = vmand %vm1008, %vm1009
        %v1012 = vsel %vm1010, 1, 0
        %v1013 = vsel %vm1011, 1, 0
        %v1014 = vcvt.s32.f32 %v1012
        %v1015 = vcvt.s32.f32 %v1013
        %v1016 = vmul.f32 %v502, %v1014
        %v1017 = vmul.f32 %v501, %v1015
        %v1018 = vlaneseq
        %v1019 = vshrl.u32 %v1018, 7
        %v1020 = vsub.s32 0, %v1019
        %v1021 = vrot.slane %v1006, %v1020
        %v1022 = vmul.f32 %v1016, %v1021
        %v1023 = vmul.f32 %v1017, %v1021
        %v1024 = vadd.f32 %v1004, %v1022
        %v1025 = vadd.f32 %v1005, %v1023
        %v1026 = vld [vmem:[%s4 + $0x1f] sm:$0x1]
        %vm1027 = vcmp.ge.s32.totalorder %v357, 4294967281
        %vm1028 = vcmp.ge.s32.totalorder %v358, 4294967281
        %vm1029 = vcmp.lt.s32.totalorder %v358, 1
        %vm1030 = vmand %vm1027, %vm526
        %vm1031 = vmand %vm1028, %vm1029
        %v1032 = vsel %vm1030, 1, 0
        %v1033 = vsel %vm1031, 1, 0
        %v1034 = vcvt.s32.f32 %v1032
        %v1035 = vcvt.s32.f32 %v1033
        %v1036 = vmul.f32 %v528, %v1034
        %v1037 = vmul.f32 %v527, %v1035
        %v1038 = vlaneseq
        %v1039 = vshrl.u32 %v1038, 7
        %v1040 = vsub.s32 0, %v1039
        %v1041 = vrot.slane %v1026, %v1040
        %v1042 = vmul.f32 %v1036, %v1041
        %v1043 = vmul.f32 %v1037, %v1041
        %v1044 = vadd.f32 %v1024, %v1042
        %v1045 = vadd.f32 %v1025, %v1043
        %1046 = vrot.lane.b32.xlu0 %v348, 112
        %v1047 = vpop.permute.xlu0 %1046
        %1048 = vrot.lane.b32.xlu0 %v353, 112
        %v1049 = vpop.permute.xlu0 %1048
        %vm1050 = vcmask 64512
        %v1051 = vsel %vm1050, %v348, 0
        %v1053 = vsel %vm1050, %v1047, 0
        %v1055 = vsel %vm1050, %v1049, 0
        %1057 = vmatprep.subr.mxu0 0.0
        %1058 = vmatpush1.xpose.msra.mxu0 %v1053
        %1059 = vmatprep.subr.mxu0 0.0
        %1060 = vmatpush1.xpose.msra.mxu0 %v1055
        %1061 = vmatprep.subr.mxu0 0.0
        %1062 = vmatpush1.xpose.msra.mxu0 0.0
        %1063 = vmatprep.subr.mxu0 0.0
        %1064 = vmatpush1.xpose.msra.mxu0 0.0
        %1065 = vmatprep.subr.mxu0 0.0
        %1066 = vmatpush1.xpose.msra.mxu0 0.0
        %1067 = vmatprep.subr.mxu0 0.0
        %1068 = vmatpush1.xpose.msra.mxu0 0.0
        %1069 = vmatprep.subr.mxu0 0.0
        %1070 = vmatpush1.xpose.msra.mxu0 0.0
        %1071 = vmatprep.subr.mxu0 0.0
        %1072 = vmatpush1.xpose.msra.mxu0 0.0
        %1073 = vmatprep.subr.mxu0 0.0
        %1074 = vmatpush1.xpose.msra.mxu0 0.0
        %1075 = vmatprep.subr.mxu0 0.0
        %1076 = vmatpush1.xpose.msra.mxu0 0.0
        %1077 = vmatprep.subr.mxu0 0.0
        %1078 = vmatpush1.xpose.msra.mxu0 0.0
        %1079 = vmatprep.subr.mxu0 0.0
        %1080 = vmatpush1.xpose.msra.mxu0 0.0
        %1081 = vmatprep.subr.mxu0 0.0
        %1082 = vmatpush1.xpose.msra.mxu0 0.0
        %1083 = vmatprep.subr.mxu0 0.0
        %1084 = vmatpush1.xpose.msra.mxu0 0.0
        %1085 = vmatprep.subr.mxu0 0.0
        %1086 = vmatpush1.xpose.msra.mxu0 0.0
        %1087 = vmatprep.subr.mxu0 0.0
        %1088 = vmatpush1.xpose.msra.mxu0 0.0
        %1089 = vmatprep.subr.mxu0 0.0
        %1090 = vmatpush1.xpose.msra.mxu0 0.0
        %1091 = vmatprep.subr.mxu0 0.0
        %1092 = vmatpush1.xpose.msra.mxu0 0.0
        %1093 = vmatprep.subr.mxu0 0.0
        %1094 = vmatpush1.xpose.msra.mxu0 0.0
        %1095 = vmatprep.subr.mxu0 0.0
        %1096 = vmatpush1.xpose.msra.mxu0 0.0
        %1097 = vmatprep.subr.mxu0 0.0
        %1098 = vmatpush1.xpose.msra.mxu0 0.0
        %1099 = vmatprep.subr.mxu0 0.0
        %1100 = vmatpush1.xpose.msra.mxu0 0.0
        %1101 = vmatprep.subr.mxu0 0.0
        %1102 = vmatpush1.xpose.msra.mxu0 0.0
        %1103 = vmatprep.subr.mxu0 0.0
        %1104 = vmatpush1.xpose.msra.mxu0 0.0
        %1105 = vmatprep.subr.mxu0 0.0
        %1106 = vmatpush1.xpose.msra.mxu0 0.0
        %1107 = vmatprep.subr.mxu0 0.0
        %1108 = vmatpush1.xpose.msra.mxu0 0.0
        %1109 = vmatprep.subr.mxu0 0.0
        %1110 = vmatpush1.xpose.msra.mxu0 0.0
        %1111 = vmatprep.subr.mxu0 0.0
        %1112 = vmatpush1.xpose.msra.mxu0 0.0
        %1113 = vmatprep.subr.mxu0 0.0
        %1114 = vmatpush1.xpose.msra.mxu0 0.0
        %1115 = vmatprep.subr.mxu0 0.0
        %1116 = vmatpush1.xpose.msra.mxu0 0.0
        %1117 = vmatprep.subr.mxu0 0.0
        %1118 = vmatpush1.xpose.msra.mxu0 0.0
        %1119 = vmatprep.subr.mxu0 0.0
        %1120 = vmatpush1.xpose.msra.mxu0 0.0
        %1121 = vmatprep.mubr.f32.mxu0 0.0
        %1122 = vmatmul.mubr.f32.gmra.mrb[0].mxu0 %v1051
        %v1123 = vpop.f32.mrb[0].mxu0
        %v1124 = vadd.f32 0.0, %v1123
        %v1125 = vpop.f32.mrb[0].mxu0
        %1126 = vdwg.mxu0
        %vm1127 = vcmask 130048
        %v1128 = vsel %vm1127, %v1124, -inf
        %1129 = vmax.xlane.f32.xlu0 %v1128
        %v1130 = vpop.xlane.xlu0 %1129
        %v1131 = vsub.f32 %v1124, %v1130
        %v1132 = vmul.f32 %v1131, 1.442695
        %v1133 = vpow.pop %v1132
        %v1134 = vsel %vm1127, %v1133, 0.0
        %1135 = vadd.xlane.f32.xlu0 %v1134
        %v1136 = vpop.xlane.xlu0 %1135
        %v1137 = vrcp.pop %v1136
        %v1138 = vmul.f32 %v1133, %v1137
        %v1140 = vsel %vm1127, %v1138, 0
        %1142 = vmatprep.subr.mxu0 0.0
        %1143 = vmatpush1.msra.mxu0 %v363
        %1144 = vmatprep.subr.mxu0 0.0
        %1145 = vmatpush1.msra.mxu0 %v365
        %1146 = vmatprep.subr.mxu0 0.0
        %1147 = vmatpush1.msra.mxu0 0.0
        %1148 = vmatprep.subr.mxu0 0.0
        %1149 = vmatpush1.msra.mxu0 0.0
        %1150 = vmatprep.subr.mxu0 0.0
        %1151 = vmatpush1.msra.mxu0 0.0
        %1152 = vmatprep.subr.mxu0 0.0
        %1153 = vmatpush1.msra.mxu0 0.0
        %1154 = vmatprep.subr.mxu0 0.0
        %1155 = vmatpush1.msra.mxu0 0.0
        %1156 = vmatprep.subr.mxu0 0.0
        %1157 = vmatpush1.msra.mxu0 0.0
        %1158 = vmatprep.subr.mxu0 0.0
        %1159 = vmatpush1.msra.mxu0 0.0
        %1160 = vmatprep.subr.mxu0 0.0
        %1161 = vmatpush1.msra.mxu0 0.0
        %1162 = vmatprep.subr.mxu0 0.0
        %1163 = vmatpush1.msra.mxu0 0.0
        %1164 = vmatprep.subr.mxu0 0.0
        %1165 = vmatpush1.msra.mxu0 0.0
        %1166 = vmatprep.subr.mxu0 0.0
        %1167 = vmatpush1.msra.mxu0 0.0
        %1168 = vmatprep.subr.mxu0 0.0
        %1169 = vmatpush1.msra.mxu0 0.0
        %1170 = vmatprep.subr.mxu0 0.0
        %1171 = vmatpush1.msra.mxu0 0.0
        %1172 = vmatprep.subr.mxu0 0.0
        %1173 = vmatpush1.msra.mxu0 0.0
        %1174 = vmatprep.subr.mxu0 0.0
        %1175 = vmatpush1.msra.mxu0 0.0
        %1176 = vmatprep.subr.mxu0 0.0
        %1177 = vmatpush1.msra.mxu0 0.0
        %1178 = vmatprep.subr.mxu0 0.0
        %1179 = vmatpush1.msra.mxu0 0.0
        %1180 = vmatprep.subr.mxu0 0.0
        %1181 = vmatpush1.msra.mxu0 0.0
        %1182 = vmatprep.subr.mxu0 0.0
        %1183 = vmatpush1.msra.mxu0 0.0
        %1184 = vmatprep.subr.mxu0 0.0
        %1185 = vmatpush1.msra.mxu0 0.0
        %1186 = vmatprep.subr.mxu0 0.0
        %1187 = vmatpush1.msra.mxu0 0.0
        %1188 = vmatprep.subr.mxu0 0.0
        %1189 = vmatpush1.msra.mxu0 0.0
        %1190 = vmatprep.subr.mxu0 0.0
        %1191 = vmatpush1.msra.mxu0 0.0
        %1192 = vmatprep.subr.mxu0 0.0
        %1193 = vmatpush1.msra.mxu0 0.0
        %1194 = vmatprep.subr.mxu0 0.0
        %1195 = vmatpush1.msra.mxu0 0.0
        %1196 = vmatprep.subr.mxu0 0.0
        %1197 = vmatpush1.msra.mxu0 0.0
        %1198 = vmatprep.subr.mxu0 0.0
        %1199 = vmatpush1.msra.mxu0 0.0
        %1200 = vmatprep.subr.mxu0 0.0
        %1201 = vmatpush1.msra.mxu0 0.0
        %1202 = vmatprep.subr.mxu0 0.0
        %1203 = vmatpush1.msra.mxu0 0.0
        %1204 = vmatprep.subr.mxu0 0.0
        %1205 = vmatpush1.msra.mxu0 0.0
        %1206 = vmatprep.mubr.f32.mxu0 0.0
        %1207 = vmatmul.mubr.f32.gmra.mrb[0].mxu0 %v1140
        %v1208 = vpop.f32.mrb[0].mxu0
        %v1209 = vadd.f32 0.0, %v1208
        %v1210 = vpop.f32.mrb[0].mxu0
        %1211 = vdwg.mxu0
        %v1212 = vsel %vm1050, %v353, 0
        %1214 = vmatprep.subr.mxu0 0.0
        %1215 = vmatpush1.xpose.msra.mxu0 %v1053
        %1216 = vmatprep.subr.mxu0 0.0
        %1217 = vmatpush1.xpose.msra.mxu0 0.0
        %1218 = vmatprep.subr.mxu0 0.0
        %1219 = vmatpush1.xpose.msra.mxu0 0.0
        %1220 = vmatprep.subr.mxu0 0.0
        %1221 = vmatpush1.xpose.msra.mxu0 0.0
        %1222 = vmatprep.subr.mxu0 0.0
        %1223 = vmatpush1.xpose.msra.mxu0 0.0
        %1224 = vmatprep.subr.mxu0 0.0
        %1225 = vmatpush1.xpose.msra.mxu0 0.0
        %1226 = vmatprep.subr.mxu0 0.0
        %1227 = vmatpush1.xpose.msra.mxu0 0.0
        %1228 = vmatprep.subr.mxu0 0.0
        %1229 = vmatpush1.xpose.msra.mxu0 0.0
        %1230 = vmatprep.subr.mxu0 0.0
        %1231 = vmatpush1.xpose.msra.mxu0 0.0
        %1232 = vmatprep.subr.mxu0 0.0
        %1233 = vmatpush1.xpose.msra.mxu0 0.0
        %1234 = vmatprep.subr.mxu0 0.0
        %1235 = vmatpush1.xpose.msra.mxu0 0.0
        %1236 = vmatprep.subr.mxu0 0.0
        %1237 = vmatpush1.xpose.msra.mxu0 0.0
        %1238 = vmatprep.subr.mxu0 0.0
        %1239 = vmatpush1.xpose.msra.mxu0 0.0
        %1240 = vmatprep.subr.mxu0 0.0
        %1241 = vmatpush1.xpose.msra.mxu0 0.0
        %1242 = vmatprep.subr.mxu0 0.0
        %1243 = vmatpush1.xpose.msra.mxu0 0.0
        %1244 = vmatprep.subr.mxu0 0.0
        %1245 = vmatpush1.xpose.msra.mxu0 0.0
        %1246 = vmatprep.subr.mxu0 0.0
        %1247 = vmatpush1.xpose.msra.mxu0 0.0
        %1248 = vmatprep.subr.mxu0 0.0
        %1249 = vmatpush1.xpose.msra.mxu0 0.0
        %1250 = vmatprep.subr.mxu0 0.0
        %1251 = vmatpush1.xpose.msra.mxu0 0.0
        %1252 = vmatprep.subr.mxu0 0.0
        %1253 = vmatpush1.xpose.msra.mxu0 0.0
        %1254 = vmatprep.subr.mxu0 0.0
        %1255 = vmatpush1.xpose.msra.mxu0 0.0
        %1256 = vmatprep.subr.mxu0 0.0
        %1257 = vmatpush1.xpose.msra.mxu0 0.0
        %1258 = vmatprep.subr.mxu0 0.0
        %1259 = vmatpush1.xpose.msra.mxu0 0.0
        %1260 = vmatprep.subr.mxu0 0.0
        %1261 = vmatpush1.xpose.msra.mxu0 0.0
        %1262 = vmatprep.subr.mxu0 0.0
        %1263 = vmatpush1.xpose.msra.mxu0 0.0
        %1264 = vmatprep.subr.mxu0 0.0
        %1265 = vmatpush1.xpose.msra.mxu0 0.0
        %1266 = vmatprep.subr.mxu0 0.0
        %1267 = vmatpush1.xpose.msra.mxu0 0.0
        %1268 = vmatprep.subr.mxu0 0.0
        %1269 = vmatpush1.xpose.msra.mxu0 0.0
        %1270 = vmatprep.subr.mxu0 0.0
        %1271 = vmatpush1.xpose.msra.mxu0 0.0
        %1272 = vmatprep.subr.mxu0 0.0
        %1273 = vmatpush1.xpose.msra.mxu0 0.0
        %1274 = vmatprep.subr.mxu0 0.0
        %1275 = vmatpush1.xpose.msra.mxu0 0.0
        %1276 = vmatprep.subr.mxu0 0.0
        %1277 = vmatpush1.xpose.msra.mxu0 0.0
        %1278 = vmatprep.mubr.f32.mxu0 0.0
        %1279 = vmatmul.mubr.f32.gmra.mrb[0].mxu0 %v1212
        %v1280 = vpop.f32.mrb[0].mxu0
        %v1281 = vadd.f32 0.0, %v1280
        %v1282 = vpop.f32.mrb[0].mxu0
        %1283 = vdwg.mxu0
        %v1284 = vsel %vm1050, %v1281, -inf
        %1285 = vmax.xlane.f32.xlu0 %v1284
        %v1286 = vpop.xlane.xlu0 %1285
        %v1287 = vsub.f32 %v1281, %v1286
        %v1288 = vmul.f32 %v1287, 1.442695
        %v1289 = vpow.pop %v1288
        %v1290 = vsel %vm1050, %v1289, 0.0
        %1291 = vadd.xlane.f32.xlu0 %v1290
        %v1292 = vpop.xlane.xlu0 %1291
        %v1293 = vrcp.pop %v1292
        %v1294 = vmul.f32 %v1289, %v1293
        %v1296 = vsel %vm1050, %v1294, 0
        %1298 = vmatprep.subr.mxu0 0.0
        %1299 = vmatpush1.msra.mxu0 %v363
        %1300 = vmatprep.subr.mxu0 0.0
        %1301 = vmatpush1.msra.mxu0 0.0
        %1302 = vmatprep.subr.mxu0 0.0
        %1303 = vmatpush1.msra.mxu0 0.0
        %1304 = vmatprep.subr.mxu0 0.0
        %1305 = vmatpush1.msra.mxu0 0.0
        %1306 = vmatprep.subr.mxu0 0.0
        %1307 = vmatpush1.msra.mxu0 0.0
        %1308 = vmatprep.subr.mxu0 0.0
        %1309 = vmatpush1.msra.mxu0 0.0
        %1310 = vmatprep.subr.mxu0 0.0
        %1311 = vmatpush1.msra.mxu0 0.0
        %1312 = vmatprep.subr.mxu0 0.0
        %1313 = vmatpush1.msra.mxu0 0.0
        %1314 = vmatprep.subr.mxu0 0.0
        %1315 = vmatpush1.msra.mxu0 0.0
        %1316 = vmatprep.subr.mxu0 0.0
        %1317 = vmatpush1.msra.mxu0 0.0
        %1318 = vmatprep.subr.mxu0 0.0
        %1319 = vmatpush1.msra.mxu0 0.0
        %1320 = vmatprep.subr.mxu0 0.0
        %1321 = vmatpush1.msra.mxu0 0.0
        %1322 = vmatprep.subr.mxu0 0.0
        %1323 = vmatpush1.msra.mxu0 0.0
        %1324 = vmatprep.subr.mxu0 0.0
        %1325 = vmatpush1.msra.mxu0 0.0
        %1326 = vmatprep.subr.mxu0 0.0
        %1327 = vmatpush1.msra.mxu0 0.0
        %1328 = vmatprep.subr.mxu0 0.0
        %1329 = vmatpush1.msra.mxu0 0.0
        %1330 = vmatprep.subr.mxu0 0.0
        %1331 = vmatpush1.msra.mxu0 0.0
        %1332 = vmatprep.subr.mxu0 0.0
        %1333 = vmatpush1.msra.mxu0 0.0
        %1334 = vmatprep.subr.mxu0 0.0
        %1335 = vmatpush1.msra.mxu0 0.0
        %1336 = vmatprep.subr.mxu0 0.0
        %1337 = vmatpush1.msra.mxu0 0.0
        %1338 = vmatprep.subr.mxu0 0.0
        %1339 = vmatpush1.msra.mxu0 0.0
        %1340 = vmatprep.subr.mxu0 0.0
        %1341 = vmatpush1.msra.mxu0 0.0
        %1342 = vmatprep.subr.mxu0 0.0
        %1343 = vmatpush1.msra.mxu0 0.0
        %1344 = vmatprep.subr.mxu0 0.0
        %1345 = vmatpush1.msra.mxu0 0.0
        %1346 = vmatprep.subr.mxu0 0.0
        %1347 = vmatpush1.msra.mxu0 0.0
        %1348 = vmatprep.subr.mxu0 0.0
        %1349 = vmatpush1.msra.mxu0 0.0
        %1350 = vmatprep.subr.mxu0 0.0
        %1351 = vmatpush1.msra.mxu0 0.0
        %1352 = vmatprep.subr.mxu0 0.0
        %1353 = vmatpush1.msra.mxu0 0.0
        %1354 = vmatprep.subr.mxu0 0.0
        %1355 = vmatpush1.msra.mxu0 0.0
        %1356 = vmatprep.subr.mxu0 0.0
        %1357 = vmatpush1.msra.mxu0 0.0
        %1358 = vmatprep.subr.mxu0 0.0
        %1359 = vmatpush1.msra.mxu0 0.0
        %1360 = vmatprep.subr.mxu0 0.0
        %1361 = vmatpush1.msra.mxu0 0.0
        %1362 = vmatprep.mubr.f32.mxu0 0.0
        %1363 = vmatmul.mubr.f32.gmra.mrb[0].mxu0 %v1296
        %v1364 = vpop.f32.mrb[0].mxu0
        %v1365 = vadd.f32 0.0, %v1364
        %v1366 = vpop.f32.mrb[0].mxu0
        %1367 = vdwg.mxu0
        %1368 = vrot.lane.b32.xlu0 %v348, 120
        %v1369 = vpop.permute.xlu0 %1368
        %1370 = vrot.lane.b32.xlu0 %v348, 104
        %v1371 = vpop.permute.xlu0 %1370
        %1372 = vrot.lane.b32.xlu0 %v353, 104
        %v1373 = vpop.permute.xlu0 %1372
        %v1374 = vsel %vm1050, %v1369, 0
        %v1376 = vsel %vm1050, %v1371, 0
        %v1378 = vsel %vm1050, %v1373, 0
        %1380 = vmatprep.subr.mxu0 0.0
        %1381 = vmatpush1.xpose.msra.mxu0 %v1376
        %1382 = vmatprep.subr.mxu0 0.0
        %1383 = vmatpush1.xpose.msra.mxu0 %v1378
        %1384 = vmatprep.subr.mxu0 0.0
        %1385 = vmatpush1.xpose.msra.mxu0 0.0
        %1386 = vmatprep.subr.mxu0 0.0
        %1387 = vmatpush1.xpose.msra.mxu0 0.0
        %1388 = vmatprep.subr.mxu0 0.0
        %1389 = vmatpush1.xpose.msra.mxu0 0.0
        %1390 = vmatprep.subr.mxu0 0.0
        %1391 = vmatpush1.xpose.msra.mxu0 0.0
        %1392 = vmatprep.subr.mxu0 0.0
        %1393 = vmatpush1.xpose.msra.mxu0 0.0
        %1394 = vmatprep.subr.mxu0 0.0
        %1395 = vmatpush1.xpose.msra.mxu0 0.0
        %1396 = vmatprep.subr.mxu0 0.0
        %1397 = vmatpush1.xpose.msra.mxu0 0.0
        %1398 = vmatprep.subr.mxu0 0.0
        %1399 = vmatpush1.xpose.msra.mxu0 0.0
        %1400 = vmatprep.subr.mxu0 0.0
        %1401 = vmatpush1.xpose.msra.mxu0 0.0
        %1402 = vmatprep.subr.mxu0 0.0
        %1403 = vmatpush1.xpose.msra.mxu0 0.0
        %1404 = vmatprep.subr.mxu0 0.0
        %1405 = vmatpush1.xpose.msra.mxu0 0.0
        %1406 = vmatprep.subr.mxu0 0.0
        %1407 = vmatpush1.xpose.msra.mxu0 0.0
        %1408 = vmatprep.subr.mxu0 0.0
        %1409 = vmatpush1.xpose.msra.mxu0 0.0
        %1410 = vmatprep.subr.mxu0 0.0
        %1411 = vmatpush1.xpose.msra.mxu0 0.0
        %1412 = vmatprep.subr.mxu0 0.0
        %1413 = vmatpush1.xpose.msra.mxu0 0.0
        %1414 = vmatprep.subr.mxu0 0.0
        %1415 = vmatpush1.xpose.msra.mxu0 0.0
        %1416 = vmatprep.subr.mxu0 0.0
        %1417 = vmatpush1.xpose.msra.mxu0 0.0
        %1418 = vmatprep.subr.mxu0 0.0
        %1419 = vmatpush1.xpose.msra.mxu0 0.0
        %1420 = vmatprep.subr.mxu0 0.0
        %1421 = vmatpush1.xpose.msra.mxu0 0.0
        %1422 = vmatprep.subr.mxu0 0.0
        %1423 = vmatpush1.xpose.msra.mxu0 0.0
        %1424 = vmatprep.subr.mxu0 0.0
        %1425 = vmatpush1.xpose.msra.mxu0 0.0
        %1426 = vmatprep.subr.mxu0 0.0
        %1427 = vmatpush1.xpose.msra.mxu0 0.0
        %1428 = vmatprep.subr.mxu0 0.0
        %1429 = vmatpush1.xpose.msra.mxu0 0.0
        %1430 = vmatprep.subr.mxu0 0.0
        %1431 = vmatpush1.xpose.msra.mxu0 0.0
        %1432 = vmatprep.subr.mxu0 0.0
        %1433 = vmatpush1.xpose.msra.mxu0 0.0
        %1434 = vmatprep.subr.mxu0 0.0
        %1435 = vmatpush1.xpose.msra.mxu0 0.0
        %1436 = vmatprep.subr.mxu0 0.0
        %1437 = vmatpush1.xpose.msra.mxu0 0.0
        %1438 = vmatprep.subr.mxu0 0.0
        %1439 = vmatpush1.xpose.msra.mxu0 0.0
        %1440 = vmatprep.subr.mxu0 0.0
        %1441 = vmatpush1.xpose.msra.mxu0 0.0
        %1442 = vmatprep.subr.mxu0 0.0
        %1443 = vmatpush1.xpose.msra.mxu0 0.0
        %1444 = vmatprep.mubr.f32.mxu0 0.0
        %1445 = vmatmul.mubr.f32.gmra.mrb[0].mxu0 %v1374
        %v1446 = vpop.f32.mrb[0].mxu0
        %v1447 = vadd.f32 0.0, %v1446
        %v1448 = vpop.f32.mrb[0].mxu0
        %1449 = vdwg.mxu0
        %v1450 = vsel %vm1127, %v1447, -inf
        %1451 = vmax.xlane.f32.xlu0 %v1450
        %v1452 = vpop.xlane.xlu0 %1451
        %v1453 = vsub.f32 %v1447, %v1452
        %v1454 = vmul.f32 %v1453, 1.442695
        %v1455 = vpow.pop %v1454
        %v1456 = vsel %vm1127, %v1455, 0.0
        %1457 = vadd.xlane.f32.xlu0 %v1456
        %v1458 = vpop.xlane.xlu0 %1457
        %v1459 = vrcp.pop %v1458
        %v1460 = vmul.f32 %v1455, %v1459
        %1461 = vrot.lane.b32.xlu0 %v348, 88
        %v1462 = vpop.permute.xlu0 %1461
        %1463 = vrot.lane.b32.xlu0 %v353, 88
        %v1464 = vpop.permute.xlu0 %1463
        %v1468 = vsel %vm1127, %v1460, 0
        %1470 = vmatprep.subr.mxu0 0.0
        %1471 = vmatpush1.msra.mxu0 %v1462
        %1472 = vmatprep.subr.mxu0 0.0
        %1473 = vmatpush1.msra.mxu0 %v1464
        %1474 = vmatprep.subr.mxu0 0.0
        %1475 = vmatpush1.msra.mxu0 0.0
        %1476 = vmatprep.subr.mxu0 0.0
        %1477 = vmatpush1.msra.mxu0 0.0
        %1478 = vmatprep.subr.mxu0 0.0
        %1479 = vmatpush1.msra.mxu0 0.0
        %1480 = vmatprep.subr.mxu0 0.0
        %1481 = vmatpush1.msra.mxu0 0.0
        %1482 = vmatprep.subr.mxu0 0.0
        %1483 = vmatpush1.msra.mxu0 0.0
        %1484 = vmatprep.subr.mxu0 0.0
        %1485 = vmatpush1.msra.mxu0 0.0
        %1486 = vmatprep.subr.mxu0 0.0
        %1487 = vmatpush1.msra.mxu0 0.0
        %1488 = vmatprep.subr.mxu0 0.0
        %1489 = vmatpush1.msra.mxu0 0.0
        %1490 = vmatprep.subr.mxu0 0.0
        %1491 = vmatpush1.msra.mxu0 0.0
        %1492 = vmatprep.subr.mxu0 0.0
        %1493 = vmatpush1.msra.mxu0 0.0
        %1494 = vmatprep.subr.mxu0 0.0
        %1495 = vmatpush1.msra.mxu0 0.0
        %1496 = vmatprep.subr.mxu0 0.0
        %1497 = vmatpush1.msra.mxu0 0.0
        %1498 = vmatprep.subr.mxu0 0.0
        %1499 = vmatpush1.msra.mxu0 0.0
        %1500 = vmatprep.subr.mxu0 0.0
        %1501 = vmatpush1.msra.mxu0 0.0
        %1502 = vmatprep.subr.mxu0 0.0
        %1503 = vmatpush1.msra.mxu0 0.0
        %1504 = vmatprep.subr.mxu0 0.0
        %1505 = vmatpush1.msra.mxu0 0.0
        %1506 = vmatprep.subr.mxu0 0.0
        %1507 = vmatpush1.msra.mxu0 0.0
        %1508 = vmatprep.subr.mxu0 0.0
        %1509 = vmatpush1.msra.mxu0 0.0
        %1510 = vmatprep.subr.mxu0 0.0
        %1511 = vmatpush1.msra.mxu0 0.0
        %1512 = vmatprep.subr.mxu0 0.0
        %1513 = vmatpush1.msra.mxu0 0.0
        %1514 = vmatprep.subr.mxu0 0.0
        %1515 = vmatpush1.msra.mxu0 0.0
        %1516 = vmatprep.subr.mxu0 0.0
        %1517 = vmatpush1.msra.mxu0 0.0
        %1518 = vmatprep.subr.mxu0 0.0
        %1519 = vmatpush1.msra.mxu0 0.0
        %1520 = vmatprep.subr.mxu0 0.0
        %1521 = vmatpush1.msra.mxu0 0.0
        %1522 = vmatprep.subr.mxu0 0.0
        %1523 = vmatpush1.msra.mxu0 0.0
        %1524 = vmatprep.subr.mxu0 0.0
        %1525 = vmatpush1.msra.mxu0 0.0
        %1526 = vmatprep.subr.mxu0 0.0
        %1527 = vmatpush1.msra.mxu0 0.0
        %1528 = vmatprep.subr.mxu0 0.0
        %1529 = vmatpush1.msra.mxu0 0.0
        %1530 = vmatprep.subr.mxu0 0.0
        %1531 = vmatpush1.msra.mxu0 0.0
        %1532 = vmatprep.subr.mxu0 0.0
        %1533 = vmatpush1.msra.mxu0 0.0
        %1534 = vmatprep.mubr.f32.mxu0 0.0
        %1535 = vmatmul.mubr.f32.gmra.mrb[0].mxu0 %v1468
        %v1536 = vpop.f32.mrb[0].mxu0
        %v1537 = vadd.f32 0.0, %v1536
        %v1538 = vpop.f32.mrb[0].mxu0
        %1539 = vdwg.mxu0
        %1540 = vrot.lane.b32.xlu0 %v353, 120
        %v1541 = vpop.permute.xlu0 %1540
        %v1542 = vsel %vm1050, %v1541, 0
        %1544 = vmatprep.subr.mxu0 0.0
        %1545 = vmatpush1.xpose.msra.mxu0 %v1376
        %1546 = vmatprep.subr.mxu0 0.0
        %1547 = vmatpush1.xpose.msra.mxu0 0.0
        %1548 = vmatprep.subr.mxu0 0.0
        %1549 = vmatpush1.xpose.msra.mxu0 0.0
        %1550 = vmatprep.subr.mxu0 0.0
        %1551 = vmatpush1.xpose.msra.mxu0 0.0
        %1552 = vmatprep.subr.mxu0 0.0
        %1553 = vmatpush1.xpose.msra.mxu0 0.0
        %1554 = vmatprep.subr.mxu0 0.0
        %1555 = vmatpush1.xpose.msra.mxu0 0.0
        %1556 = vmatprep.subr.mxu0 0.0
        %1557 = vmatpush1.xpose.msra.mxu0 0.0
        %1558 = vmatprep.subr.mxu0 0.0
        %1559 = vmatpush1.xpose.msra.mxu0 0.0
        %1560 = vmatprep.subr.mxu0 0.0
        %1561 = vmatpush1.xpose.msra.mxu0 0.0
        %1562 = vmatprep.subr.mxu0 0.0
        %1563 = vmatpush1.xpose.msra.mxu0 0.0
        %1564 = vmatprep.subr.mxu0 0.0
        %1565 = vmatpush1.xpose.msra.mxu0 0.0
        %1566 = vmatprep.subr.mxu0 0.0
        %1567 = vmatpush1.xpose.msra.mxu0 0.0
        %1568 = vmatprep.subr.mxu0 0.0
        %1569 = vmatpush1.xpose.msra.mxu0 0.0
        %1570 = vmatprep.subr.mxu0 0.0
        %1571 = vmatpush1.xpose.msra.mxu0 0.0
        %1572 = vmatprep.subr.mxu0 0.0
        %1573 = vmatpush1.xpose.msra.mxu0 0.0
        %1574 = vmatprep.subr.mxu0 0.0
        %1575 = vmatpush1.xpose.msra.mxu0 0.0
        %1576 = vmatprep.subr.mxu0 0.0
        %1577 = vmatpush1.xpose.msra.mxu0 0.0
        %1578 = vmatprep.subr.mxu0 0.0
        %1579 = vmatpush1.xpose.msra.mxu0 0.0
        %1580 = vmatprep.subr.mxu0 0.0
        %1581 = vmatpush1.xpose.msra.mxu0 0.0
        %1582 = vmatprep.subr.mxu0 0.0
        %1583 = vmatpush1.xpose.msra.mxu0 0.0
        %1584 = vmatprep.subr.mxu0 0.0
        %1585 = vmatpush1.xpose.msra.mxu0 0.0
        %1586 = vmatprep.subr.mxu0 0.0
        %1587 = vmatpush1.xpose.msra.mxu0 0.0
        %1588 = vmatprep.subr.mxu0 0.0
        %1589 = vmatpush1.xpose.msra.mxu0 0.0
        %1590 = vmatprep.subr.mxu0 0.0
        %1591 = vmatpush1.xpose.msra.mxu0 0.0
        %1592 = vmatprep.subr.mxu0 0.0
        %1593 = vmatpush1.xpose.msra.mxu0 0.0
        %1594 = vmatprep.subr.mxu0 0.0
        %1595 = vmatpush1.xpose.msra.mxu0 0.0
        %1596 = vmatprep.subr.mxu0 0.0
        %1597 = vmatpush1.xpose.msra.mxu0 0.0
        %1598 = vmatprep.subr.mxu0 0.0
        %1599 = vmatpush1.xpose.msra.mxu0 0.0
        %1600 = vmatprep.subr.mxu0 0.0
        %1601 = vmatpush1.xpose.msra.mxu0 0.0
        %1602 = vmatprep.subr.mxu0 0.0
        %1603 = vmatpush1.xpose.msra.mxu0 0.0
        %1604 = vmatprep.subr.mxu0 0.0
        %1605 = vmatpush1.xpose.msra.mxu0 0.0
        %1606 = vmatprep.subr.mxu0 0.0
        %1607 = vmatpush1.xpose.msra.mxu0 0.0
        %1608 = vmatprep.mubr.f32.mxu0 0.0
        %1609 = vmatmul.mubr.f32.gmra.mrb[0].mxu0 %v1542
        %v1610 = vpop.f32.mrb[0].mxu0
        %v1611 = vadd.f32 0.0, %v1610
        %v1612 = vpop.f32.mrb[0].mxu0
        %1613 = vdwg.mxu0
        %v1614 = vsel %vm1050, %v1611, -inf
        %1615 = vmax.xlane.f32.xlu0 %v1614
        %v1616 = vpop.xlane.xlu0 %1615
        %v1617 = vsub.f32 %v1611, %v1616
        %v1618 = vmul.f32 %v1617, 1.442695
        %v1619 = vpow.pop %v1618
        %v1620 = vsel %vm1050, %v1619, 0.0
        %1621 = vadd.xlane.f32.xlu0 %v1620
        %v1622 = vpop.xlane.xlu0 %1621
        %v1623 = vrcp.pop %v1622
        %v1624 = vmul.f32 %v1619, %v1623
        %v1626 = vsel %vm1050, %v1624, 0
        %1628 = vmatprep.subr.mxu0 0.0
        %1629 = vmatpush1.msra.mxu0 %v1462
        %1630 = vmatprep.subr.mxu0 0.0
        %1631 = vmatpush1.msra.mxu0 0.0
        %1632 = vmatprep.subr.mxu0 0.0
        %1633 = vmatpush1.msra.mxu0 0.0
        %1634 = vmatprep.subr.mxu0 0.0
        %1635 = vmatpush1.msra.mxu0 0.0
        %1636 = vmatprep.subr.mxu0 0.0
        %1637 = vmatpush1.msra.mxu0 0.0
        %1638 = vmatprep.subr.mxu0 0.0
        %1639 = vmatpush1.msra.mxu0 0.0
        %1640 = vmatprep.subr.mxu0 0.0
        %1641 = vmatpush1.msra.mxu0 0.0
        %1642 = vmatprep.subr.mxu0 0.0
        %1643 = vmatpush1.msra.mxu0 0.0
        %1644 = vmatprep.subr.mxu0 0.0
        %1645 = vmatpush1.msra.mxu0 0.0
        %1646 = vmatprep.subr.mxu0 0.0
        %1647 = vmatpush1.msra.mxu0 0.0
        %1648 = vmatprep.subr.mxu0 0.0
        %1649 = vmatpush1.msra.mxu0 0.0
        %1650 = vmatprep.subr.mxu0 0.0
        %1651 = vmatpush1.msra.mxu0 0.0
        %1652 = vmatprep.subr.mxu0 0.0
        %1653 = vmatpush1.msra.mxu0 0.0
        %1654 = vmatprep.subr.mxu0 0.0
        %1655 = vmatpush1.msra.mxu0 0.0
        %1656 = vmatprep.subr.mxu0 0.0
        %1657 = vmatpush1.msra.mxu0 0.0
        %1658 = vmatprep.subr.mxu0 0.0
        %1659 = vmatpush1.msra.mxu0 0.0
        %1660 = vmatprep.subr.mxu0 0.0
        %1661 = vmatpush1.msra.mxu0 0.0
        %1662 = vmatprep.subr.mxu0 0.0
        %1663 = vmatpush1.msra.mxu0 0.0
        %1664 = vmatprep.subr.mxu0 0.0
        %1665 = vmatpush1.msra.mxu0 0.0
        %1666 = vmatprep.subr.mxu0 0.0
        %1667 = vmatpush1.msra.mxu0 0.0
        %1668 = vmatprep.subr.mxu0 0.0
        %1669 = vmatpush1.msra.mxu0 0.0
        %1670 = vmatprep.subr.mxu0 0.0
        %1671 = vmatpush1.msra.mxu0 0.0
        %1672 = vmatprep.subr.mxu0 0.0
        %1673 = vmatpush1.msra.mxu0 0.0
        %1674 = vmatprep.subr.mxu0 0.0
        %1675 = vmatpush1.msra.mxu0 0.0
        %1676 = vmatprep.subr.mxu0 0.0
        %1677 = vmatpush1.msra.mxu0 0.0
        %1678 = vmatprep.subr.mxu0 0.0
        %1679 = vmatpush1.msra.mxu0 0.0
        %1680 = vmatprep.subr.mxu0 0.0
        %1681 = vmatpush1.msra.mxu0 0.0
        %1682 = vmatprep.subr.mxu0 0.0
        %1683 = vmatpush1.msra.mxu0 0.0
        %1684 = vmatprep.subr.mxu0 0.0
        %1685 = vmatpush1.msra.mxu0 0.0
        %1686 = vmatprep.subr.mxu0 0.0
        %1687 = vmatpush1.msra.mxu0 0.0
        %1688 = vmatprep.subr.mxu0 0.0
        %1689 = vmatpush1.msra.mxu0 0.0
        %1690 = vmatprep.subr.mxu0 0.0
        %1691 = vmatpush1.msra.mxu0 0.0
        %1692 = vmatprep.mubr.f32.mxu0 0.0
        %1693 = vmatmul.mubr.f32.gmra.mrb[0].mxu0 %v1626
        %v1694 = vpop.f32.mrb[0].mxu0
        %v1695 = vadd.f32 0.0, %v1694
        %v1696 = vpop.f32.mrb[0].mxu0
        %1697 = vdwg.mxu0
        %1699 = vrot.lane.b32.xlu0 %v1537, 8
        %v1700 = vpop.permute.xlu0 %1699
        %v1702 = vsel %vm1050, %v1209, %v1700
        %1704 = vrot.lane.b32.xlu0 %v1695, 8
        %v1705 = vpop.permute.xlu0 %1704
        %v1707 = vsel %vm1050, %v1365, %v1705
        %v1708 = vadd.f32 %v1702, %v1044
        %1709 = vst.msk [vmem:[%s217] sm:$0xff] %vm1127, %v1708
        %v1710 = vadd.f32 %v1707, %v1045
        %1711 = vst.msk [vmem:[%s217 + $0x8] sm:$0xff] %vm1127, %v1710
        %s1712 = sand.u32 %s137, 1
        %s1713 = scalar_lea.sflag [#allocation3], %s1712
        %s1714 = sand.u32 %s137, 1
        %s1715 = smul.addr %s1714, 16
        %s1716 = scalar_lea.vmem [#allocation2], %s1715
        // Predicated region
        $region41: #{tpu_custom_call.1} parent=39 // pred_check
          %p1717 = pneg %p147
        $region42: #{tpu_custom_call.1} parent=39 // pred_check_branch
          %1719 = sbr.rel (%p1717) target = $region44
        $region43: #{tpu_custom_call.1} parent=39 // pred_region
          %s1721 = ssub.s32 256, 256
          %1722 = vsyncadd %s1713, %s1721
          %s1723 = smul.addr %s19, 2
          %s1724 = smul.addr %s1723, 128
          %s1725 = scalar_lea.hbm %s5, %s1724
          %s1726 = sshll.u32 %s1716, 4
          %s1727 = int_to_ptr.vmem [resolvable:$true] %s1726
          %1732 = dma.vmem_to_hbm [thread:$0]  %s1727, 256, %s1725, %s1713, 128, 128, 8
        $region44: #{tpu_custom_call.1} parent=39 // pred_fallthru
          _
      $region40: #{tpu_custom_call.1} parent=5 // pred_fallthru
        _
      %p1733 = scmp.le.s32.totalorder 2, %s14
      // Predicated region
      $region45: #{tpu_custom_call.1} parent=5 // pred_check
        %p1734 = pneg %p1733
      $region46: #{tpu_custom_call.1} parent=5 // pred_check_branch
        %1736 = sbr.rel (%p1734) target = $region48
      $region47: #{tpu_custom_call.1} parent=5 // pred_region
        %s1737 = ssub.s32 %s14, 2
        // Predicated region
        $region49: #{tpu_custom_call.1} parent=47 // pred_check
          %p1738 = pneg %p153
        $region50: #{tpu_custom_call.1} parent=47 // pred_check_branch
          %1740 = sbr.rel (%p1738) target = $region52
        $region51: #{tpu_custom_call.1} parent=47 // pred_region
          %s1741 = sand.u32 %s138, 1
          %s1742 = scalar_lea.sflag [#allocation3], %s1741
          %s1743 = sand.u32 %s138, 1
          %s1744 = smul.addr %s1743, 16
          %s1745 = scalar_lea.vmem [#allocation2], %s1744
          %1746 = dma.done %s1742, 256
        $region52: #{tpu_custom_call.1} parent=47 // pred_fallthru
          _
      $region48: #{tpu_custom_call.1} parent=5 // pred_fallthru
        _
    $region6: #{tpu_custom_call.1} parent=1 // loop_footer
      %s18 = sadd.s32 1, %s14
    $region7: #{tpu_custom_call.1} parent=1 // loop_footer_branch
      %13 = sbr.rel target = $region3
    $region8: #{tpu_custom_call.1} parent=1 // loop_exit
      _
    %1747 = vsyncpa [#allocation3], 1
    %s1748 = scalar_lea.sflag [#allocation3], 1
    %1749 = vsyncpa %s1748, 1

</llo_original>
